<compile_context>
chip_gen: v5e
topology: v5e:2x2
jax: 0.10.0
libtpu: 0.0.40
codegen_flags: <defaults>
</compile_context>

<pallas_src>
import math
import numpy as np
import jax
import jax.numpy as jnp
from jax import lax
from jax.experimental import pallas as pl
from jax.experimental.pallas import tpu as pltpu


# ---------------------------------------------------------------------------
# helpers
# ---------------------------------------------------------------------------
def _round_up(x, m):
    return ((x + m - 1) // m) * m


def _pad_gate_cols(mat, H, Hp):
    """(K, 3H) -> (K, 3Hp): gate g's H columns land at lane-aligned offset g*Hp."""
    K = mat.shape[0]
    out = jnp.zeros((K, 3 * Hp), mat.dtype)
    for g in range(3):
        out = out.at[:, g * Hp:g * Hp + H].set(mat[:, g * H:(g + 1) * H])
    return out


# ---------------------------------------------------------------------------
# fused GRU kernel: one grid step == one (batch block, time block) tile
# ---------------------------------------------------------------------------
def _gru_fused_kernel(x_ref, h0_ref, wih_ref, whh_ref, gib_ref, bhhn_ref,
                      out_ref, h_scratch, gi_scratch):
    T_blk, B_blk, I = x_ref.shape
    Hp = out_ref.shape[-1]

    # (Re)initialize the hidden carry at the start of every batch block's
    # time loop (time is the innermost / fastest grid axis).
    @pl.when(pl.program_id(1) == 0)
    def _():
        h_scratch[...] = h0_ref[...].astype(jnp.float32)

    # Fused non-recurrent projection for the whole time block: one MXU matmul,
    # independent of h, so it rides in otherwise-idle MXU/DMA slots.
    x_blk = x_ref[...].reshape(T_blk * B_blk, I)                       # bf16
    gi = jnp.dot(x_blk, wih_ref[...], preferred_element_type=jnp.float32)
    gi = gi + gib_ref[...]                 # b_ih + b_hh_{r,z} folded in wrapper
    gi_scratch[...] = gi.reshape(T_blk, B_blk, 3 * Hp)

    # Tiny hoisted broadcast (n-gate hidden bias), ~1 vreg.
    bhh_n = jnp.broadcast_to(bhhn_ref[...], (B_blk, Hp))

    def _sigmoid(v):
        # EUP-friendly: one tanh instead of exp + divide.
        return 0.5 * jnp.tanh(0.5 * v) + 0.5

    def step(t, h):
        # Hidden projection: the only matmul on the serial critical path.
        # W_hh is read from VMEM per step (no long-lived hoisted weight value).
        # TODO(synk): weight-stationary MXU driving (pltpu.matmul_push_rhs /
        # matmul_acc_lhs) to keep W_hh staged across the time block.
        gh = jnp.dot(h.astype(jnp.bfloat16), whh_ref[...],
                     preferred_element_type=jnp.float32)               # (B, 3Hp)
        gi_t = gi_scratch[t]                                           # (B, 3Hp)
        r = _sigmoid(gi_t[:, :Hp] + gh[:, :Hp])
        z = _sigmoid(gi_t[:, Hp:2 * Hp] + gh[:, Hp:2 * Hp])
        n = jnp.tanh(gi_t[:, 2 * Hp:] + r * (gh[:, 2 * Hp:] + bhh_n))
        h_new = (1.0 - z) * n + z * h
        out_ref[t] = h_new.astype(out_ref.dtype)
        return h_new

    h_scratch[...] = lax.fori_loop(0, T_blk, step, h_scratch[...], unroll=True)


# ---------------------------------------------------------------------------
# wrapper
# ---------------------------------------------------------------------------
def encoder_rnn_forward(x, h0, w_ih, w_hh, b_ih, b_hh, *, time_block=32):
    """EncoderRNN.forward: x (S,B,I), h0 (1,B,H) -> (output (S,B,H), hidden (1,B,H))."""
    S, B, I = x.shape
    H = h0.shape[-1]
    f32, bf16 = jnp.float32, jnp.bfloat16

    Hp = _round_up(H, 128)                 # lane alignment; gates at 128-multiples

    # Batch blocking: >=2 blocks when batch allows, so the 'parallel' axis can
    # be split across v7x's two TensorCores (no effect on v5e/v6e).
    Bp0 = _round_up(B, 8)
    n_bblk = 2 if Bp0 >= 16 else 1
    B_blk = _round_up(-(-Bp0 // n_bblk), 8)
    Bp = n_bblk * B_blk

    # Time blocking: balanced blocks with minimal padding (pad S up, don't
    # shrink T_blk to a divisor of S).
    n_tblk = -(-S // time_block)
    T_blk = -(-S // n_tblk)
    Sp = n_tblk * T_blk

    # --- gate-blocked, lane-padded parameters (bf16 on the MXU path) ----------
    wih_t = _pad_gate_cols(w_ih.astype(f32).T, H, Hp).astype(bf16)            # (I,  3Hp)
    whh_t = _pad_gate_cols(w_hh.astype(f32).T, H, Hp)                         # (H,  3Hp)
    whh_t = jnp.zeros((Hp, 3 * Hp), f32).at[:H].set(whh_t).astype(bf16)       # (Hp, 3Hp)
    bih_p = _pad_gate_cols(b_ih.astype(f32).reshape(1, 3 * H), H, Hp)         # (1,  3Hp)
    bhh_p = _pad_gate_cols(b_hh.astype(f32).reshape(1, 3 * H), H, Hp)         # (1,  3Hp)
    # Fold b_ih plus the r/z part of b_hh into the fused projection bias; only
    # the n-gate hidden bias stays inside: n = tanh(gi_n + r * (gh_n + b_hn)).
    gi_bias = bih_p + bhh_p.at[:, 2 * Hp:].set(0.0)                           # (1, 3Hp)
    bhh_n = bhh_p[:, 2 * Hp:]                                                 # (1, Hp)

    # --- pad activations; padded lanes/rows/steps stay exactly zero -----------
    x_p = jnp.zeros((Sp, Bp, I), bf16).at[:S, :B, :].set(x.astype(bf16))
    h0_p = jnp.zeros((Bp, Hp), f32).at[:B, :H].set(h0[0].astype(f32))

    const_buf = pl.Buffered(1)   # constant-index blocks: no double buffering

    out_p = pl.pallas_call(
        _gru_fused_kernel,
        out_shape=jax.ShapeDtypeStruct((Sp, Bp, Hp), f32),
        grid_spec=pltpu.PrefetchScalarGridSpec(
            num_scalar_prefetch=0,
            grid=(n_bblk, n_tblk),            # (batch blocks, time blocks)
            in_specs=[
                pl.BlockSpec((T_blk, B_blk, I), lambda b, t: (t, b, 0)),      # x tile
                pl.BlockSpec((B_blk, Hp), lambda b, t: (b, 0)),               # h0
                pl.BlockSpec((I, 3 * Hp), lambda b, t: (0, 0),
                             pipeline_mode=const_buf),                        # W_ih^T
                pl.BlockSpec((Hp, 3 * Hp), lambda b, t: (0, 0),
                             pipeline_mode=const_buf),                        # W_hh^T
                pl.BlockSpec((1, 3 * Hp), lambda b, t: (0, 0),
                             pipeline_mode=const_buf),                        # folded bias
                pl.BlockSpec((1, Hp), lambda b, t: (0, 0),
                             pipeline_mode=const_buf),                        # b_hh (n gate)
            ],
            out_specs=pl.BlockSpec((T_blk, B_blk, Hp), lambda b, t: (t, b, 0)),
            scratch_shapes=[
                pltpu.VMEM((B_blk, Hp), jnp.float32),            # carried hidden
                pltpu.VMEM((T_blk, B_blk, 3 * Hp), jnp.float32),  # in-block gi
            ],
        ),
        compiler_params=pltpu.CompilerParams(
            # batch blocks are independent (megacore); time is sequential
            dimension_semantics=("parallel", "arbitrary"),
            vmem_limit_bytes=64 * 1024 * 1024),
    )(x_p, h0_p, wih_t, whh_t, gi_bias, bhh_n)

    output = out_p[:S, :B, :H]
    hidden = output[-1:]          # final hidden == last real output step (exact, f32)
    return output, hidden


# ---------------------------------------------------------------------------
# pure-JAX reference (PyTorch nn.GRU semantics) and demo
# ---------------------------------------------------------------------------
def gru_reference(x, h0, w_ih, w_hh, b_ih, b_hh):
    H = h0.shape[-1]

    def step(h, x_t):
        gi = x_t @ w_ih.T + b_ih
        gh = h @ w_hh.T + b_hh
        r = jax.nn.sigmoid(gi[:, :H] + gh[:, :H])
        z = jax.nn.sigmoid(gi[:, H:2 * H] + gh[:, H:2 * H])
        n = jnp.tanh(gi[:, 2 * H:] + r * gh[:, 2 * H:])
        h_new = (1.0 - z) * n + z * h
        return h_new, h_new

    h_last, outs = jax.lax.scan(step, h0[0], x)
    return outs, h_last[None]


if __name__ == "__main__":
    # Small shapes consistent with the module docstring ([seq, batch, input]).
    S, B, I, H = 8, 4, 16, 32

    key = jax.random.PRNGKey(0)
    kx, kh, k1, k2, k3, k4 = jax.random.split(key, 6)

    x = jax.random.normal(kx, (S, B, I), dtype=jnp.float32)
    h0 = jax.random.normal(kh, (1, B, H), dtype=jnp.float32)

    bound = 1.0 / math.sqrt(H)
    w_ih = jax.random.uniform(k1, (3 * H, I), minval=-bound, maxval=bound, dtype=jnp.float32)
    w_hh = jax.random.uniform(k2, (3 * H, H), minval=-bound, maxval=bound, dtype=jnp.float32)
    b_ih = jax.random.uniform(k3, (3 * H,), minval=-bound, maxval=bound, dtype=jnp.float32)
    b_hh = jax.random.uniform(k4, (3 * H,), minval=-bound, maxval=bound, dtype=jnp.float32)

    out, h_n = encoder_rnn_forward(x, h0, w_ih, w_hh, b_ih, b_hh)
    out = jax.block_until_ready(out)
    h_n = jax.block_until_ready(h_n)

    out_ref, h_n_ref = gru_reference(x, h0, w_ih, w_hh, b_ih, b_hh)
    # bf16 MXU path with f32 accumulation -> relaxed (but still tight) tolerance.
    np.testing.assert_allclose(np.asarray(out), np.asarray(out_ref), rtol=2e-2, atol=2e-2)
    np.testing.assert_allclose(np.asarray(h_n), np.asarray(h_n_ref), rtol=2e-2, atol=2e-2)

    assert out.shape == (S, B, H) and h_n.shape == (1, B, H)
    print("KERNEL_OK")
</pallas_src>

<mosaic_0001>
module attributes {stable_mosaic.version = 11 : i64} {
  func.func @_gru_fused_kernel(%arg0: i32, %arg1: i32, %arg2: memref<8x8x16xbf16, #tpu.memory_space<vmem>>, %arg3: memref<8x128xf32, #tpu.memory_space<vmem>>, %arg4: memref<16x384xbf16, #tpu.memory_space<vmem>>, %arg5: memref<128x384xbf16, #tpu.memory_space<vmem>>, %arg6: memref<1x384xf32, #tpu.memory_space<vmem>>, %arg7: memref<1x128xf32, #tpu.memory_space<vmem>>, %arg8: memref<8x8x128xf32, #tpu.memory_space<vmem>>, %arg9: memref<8x128xf32, #tpu.memory_space<vmem>>, %arg10: memref<8x8x384xf32, #tpu.memory_space<vmem>>) attributes {dimension_semantics = [#tpu.dimension_semantics<parallel>, #tpu.dimension_semantics<arbitrary>], iteration_bounds = array<i64: 1, 1>, scalar_prefetch = 0 : i64, scratch_operands = 2 : i64, tpu.core_type = #tpu.core_type<tc>, window_params = [{transform_indices = @transform_0, window_bounds = array<i64: 8, 8, 16>}, {transform_indices = @transform_1, window_bounds = array<i64: 8, 128>}, {pipeline_mode = #tpu.pipeline_mode<synchronous>, transform_indices = @transform_2, window_bounds = array<i64: 16, 384>}, {pipeline_mode = #tpu.pipeline_mode<synchronous>, transform_indices = @transform_3, window_bounds = array<i64: 128, 384>}, {pipeline_mode = #tpu.pipeline_mode<synchronous>, transform_indices = @transform_4, window_bounds = array<i64: 1, 384>}, {pipeline_mode = #tpu.pipeline_mode<synchronous>, transform_indices = @transform_5, window_bounds = array<i64: 1, 128>}, {transform_indices = @transform_6, window_bounds = array<i64: 8, 8, 128>}]} {
    %c0_i32 = arith.constant 0 : i32
    %0 = arith.cmpi eq, %arg1, %c0_i32 : i32
    %1 = arith.extui %0 : i1 to i32
    %c0_i32_0 = arith.constant 0 : i32
    %2 = arith.cmpi ne, %1, %c0_i32_0 : i32
    scf.if %2 {
      %c0_129 = arith.constant 0 : index
      %c0_130 = arith.constant 0 : index
      %345 = vector.load %arg3[%c0_129, %c0_130] : memref<8x128xf32, #tpu.memory_space<vmem>>, vector<8x128xf32>
      %c0_131 = arith.constant 0 : index
      %c0_132 = arith.constant 0 : index
      %346 = vector.load %arg9[%c0_131, %c0_132] : memref<8x128xf32, #tpu.memory_space<vmem>>, vector<8x128xf32>
      tpu.vector_store %arg9[%c0_131, %c0_132], %345 {strides = array<i32>} : memref<8x128xf32, #tpu.memory_space<vmem>>, vector<8x128xf32>,
    } else {
    }
    %c0 = arith.constant 0 : index
    %c0_1 = arith.constant 0 : index
    %c0_2 = arith.constant 0 : index
    %3 = vector.load %arg2[%c0, %c0_1, %c0_2] : memref<8x8x16xbf16, #tpu.memory_space<vmem>>, vector<8x8x16xbf16>
    %4 = vector.shape_cast %3 : vector<8x8x16xbf16> to vector<64x16xbf16>
    %c0_3 = arith.constant 0 : index
    %c0_4 = arith.constant 0 : index
    %5 = vector.load %arg4[%c0_3, %c0_4] : memref<16x384xbf16, #tpu.memory_space<vmem>>, vector<16x384xbf16>
    %cst = arith.constant dense<0.000000e+00> : vector<64x384xf32>
    %6 = tpu.matmul %4, %5, %cst {dimension_numbers = #tpu.dot_dimension_numbers<[1], [0], [0], [1], [0, 0, 1, 1], [], []>} : vector<64x16xbf16>, vector<16x384xbf16>, vector<64x384xf32> -> vector<64x384xf32>
    %c0_5 = arith.constant 0 : index
    %c0_6 = arith.constant 0 : index
    %7 = vector.load %arg6[%c0_5, %c0_6] : memref<1x384xf32, #tpu.memory_space<vmem>>, vector<1x384xf32>
    %8 = vector.broadcast %7 : vector<1x384xf32> to vector<64x384xf32>
    %9 = arith.addf %6, %8 : vector<64x384xf32>
    %10 = vector.shape_cast %9 : vector<64x384xf32> to vector<8x8x384xf32>
    %c0_7 = arith.constant 0 : index
    %c0_8 = arith.constant 0 : index
    %c0_9 = arith.constant 0 : index
    %11 = vector.load %arg10[%c0_7, %c0_8, %c0_9] : memref<8x8x384xf32, #tpu.memory_space<vmem>>, vector<8x8x384xf32>
    tpu.vector_store %arg10[%c0_7, %c0_8, %c0_9], %10 {strides = array<i32>} : memref<8x8x384xf32, #tpu.memory_space<vmem>>, vector<8x8x384xf32>,
    %c0_10 = arith.constant 0 : index
    %c0_11 = arith.constant 0 : index
    %12 = vector.load %arg7[%c0_10, %c0_11] : memref<1x128xf32, #tpu.memory_space<vmem>>, vector<1x128xf32>
    %13 = vector.shape_cast %12 : vector<1x128xf32> to vector<1x128xf32>
    %14 = vector.broadcast %13 : vector<1x128xf32> to vector<8x128xf32>
    %c0_12 = arith.constant 0 : index
    %c0_13 = arith.constant 0 : index
    %15 = vector.load %arg9[%c0_12, %c0_13] : memref<8x128xf32, #tpu.memory_space<vmem>>, vector<8x128xf32>
    %c0_i32_14 = arith.constant 0 : i32
    %16 = arith.truncf %15 : vector<8x128xf32> to vector<8x128xbf16>
    %c0_15 = arith.constant 0 : index
    %c0_16 = arith.constant 0 : index
    %17 = vector.load %arg5[%c0_15, %c0_16] : memref<128x384xbf16, #tpu.memory_space<vmem>>, vector<128x384xbf16>
    %cst_17 = arith.constant dense<0.000000e+00> : vector<8x384xf32>
    %18 = tpu.matmul %16, %17, %cst_17 {dimension_numbers = #tpu.dot_dimension_numbers<[1], [0], [0], [1], [0, 0, 1, 1], [], []>} : vector<8x128xbf16>, vector<128x384xbf16>, vector<8x384xf32> -> vector<8x384xf32>
    %19 = arith.index_cast %c0_i32_14 : i32 to index
    %c0_18 = arith.constant 0 : index
    %c0_19 = arith.constant 0 : index
    %20 = vector.load %arg10[%19, %c0_18, %c0_19] : memref<8x8x384xf32, #tpu.memory_space<vmem>>, vector<1x8x384xf32>
    %21 = vector.shape_cast %20 : vector<1x8x384xf32> to vector<8x384xf32>
    %22 = vector.extract_strided_slice %21 {offsets = [0, 0], sizes = [8, 128], strides = [1, 1]} : vector<8x384xf32> to vector<8x128xf32>
    %23 = vector.extract_strided_slice %18 {offsets = [0, 0], sizes = [8, 128], strides = [1, 1]} : vector<8x384xf32> to vector<8x128xf32>
    %24 = arith.addf %22, %23 : vector<8x128xf32>
    %cst_20 = arith.constant 5.000000e-01 : f32
    %25 = vector.broadcast %cst_20 : f32 to vector<8x128xf32>
    %26 = arith.mulf %25, %24 : vector<8x128xf32>
    %27 = math.tanh %26 : vector<8x128xf32>
    %cst_21 = arith.constant 5.000000e-01 : f32
    %28 = vector.broadcast %cst_21 : f32 to vector<8x128xf32>
    %29 = arith.mulf %28, %27 : vector<8x128xf32>
    %cst_22 = arith.constant 5.000000e-01 : f32
    %30 = vector.broadcast %cst_22 : f32 to vector<8x128xf32>
    %31 = arith.addf %29, %30 : vector<8x128xf32>
    %32 = vector.extract_strided_slice %21 {offsets = [0, 128], sizes = [8, 128], strides = [1, 1]} : vector<8x384xf32> to vector<8x128xf32>
    %33 = vector.extract_strided_slice %18 {offsets = [0, 128], sizes = [8, 128], strides = [1, 1]} : vector<8x384xf32> to vector<8x128xf32>
    %34 = arith.addf %32, %33 : vector<8x128xf32>
    %cst_23 = arith.constant 5.000000e-01 : f32
    %35 = vector.broadcast %cst_23 : f32 to vector<8x128xf32>
    %36 = arith.mulf %35, %34 : vector<8x128xf32>
    %37 = math.tanh %36 : vector<8x128xf32>
    %cst_24 = arith.constant 5.000000e-01 : f32
    %38 = vector.broadcast %cst_24 : f32 to vector<8x128xf32>
    %39 = arith.mulf %38, %37 : vector<8x128xf32>
    %cst_25 = arith.constant 5.000000e-01 : f32
    %40 = vector.broadcast %cst_25 : f32 to vector<8x128xf32>
    %41 = arith.addf %39, %40 : vector<8x128xf32>
    %42 = vector.extract_strided_slice %21 {offsets = [0, 256], sizes = [8, 128], strides = [1, 1]} : vector<8x384xf32> to vector<8x128xf32>
    %43 = vector.extract_strided_slice %18 {offsets = [0, 256], sizes = [8, 128], strides = [1, 1]} : vector<8x384xf32> to vector<8x128xf32>
    %44 = arith.addf %43, %14 : vector<8x128xf32>
    %45 = arith.mulf %31, %44 : vector<8x128xf32>
    %46 = arith.addf %42, %45 : vector<8x128xf32>
    %47 = math.tanh %46 : vector<8x128xf32>
    %cst_26 = arith.constant 1.000000e+00 : f32
    %48 = vector.broadcast %cst_26 : f32 to vector<8x128xf32>
    %49 = arith.subf %48, %41 : vector<8x128xf32>
    %50 = arith.mulf %49, %47 : vector<8x128xf32>
    %51 = arith.mulf %41, %15 : vector<8x128xf32>
    %52 = arith.addf %50, %51 : vector<8x128xf32>
    %53 = arith.index_cast %c0_i32_14 : i32 to index
    %c0_27 = arith.constant 0 : index
    %c0_28 = arith.constant 0 : index
    %54 = vector.load %arg8[%53, %c0_27, %c0_28] : memref<8x8x128xf32, #tpu.memory_space<vmem>>, vector<1x8x128xf32>
    %55 = vector.shape_cast %54 : vector<1x8x128xf32> to vector<8x128xf32>
    %56 = vector.shape_cast %52 : vector<8x128xf32> to vector<1x8x128xf32>
    tpu.vector_store %arg8[%53, %c0_27, %c0_28], %56 {strides = array<i32>} : memref<8x8x128xf32, #tpu.memory_space<vmem>>, vector<1x8x128xf32>,
    %c1_i32 = arith.constant 1 : i32
    %57 = arith.truncf %52 : vector<8x128xf32> to vector<8x128xbf16>
    %c0_29 = arith.constant 0 : index
    %c0_30 = arith.constant 0 : index
    %58 = vector.load %arg5[%c0_29, %c0_30] : memref<128x384xbf16, #tpu.memory_space<vmem>>, vector<128x384xbf16>
    %cst_31 = arith.constant dense<0.000000e+00> : vector<8x384xf32>
    %59 = tpu.matmul %57, %58, %cst_31 {dimension_numbers = #tpu.dot_dimension_numbers<[1], [0], [0], [1], [0, 0, 1, 1], [], []>} : vector<8x128xbf16>, vector<128x384xbf16>, vector<8x384xf32> -> vector<8x384xf32>
    %60 = arith.index_cast %c1_i32 : i32 to index
    %c0_32 = arith.constant 0 : index
    %c0_33 = arith.constant 0 : index
    %61 = vector.load %arg10[%60, %c0_32, %c0_33] : memref<8x8x384xf32, #tpu.memory_space<vmem>>, vector<1x8x384xf32>
    %62 = vector.shape_cast %61 : vector<1x8x384xf32> to vector<8x384xf32>
    %63 = vector.extract_strided_slice %62 {offsets = [0, 0], sizes = [8, 128], strides = [1, 1]} : vector<8x384xf32> to vector<8x128xf32>
    %64 = vector.extract_strided_slice %59 {offsets = [0, 0], sizes = [8, 128], strides = [1, 1]} : vector<8x384xf32> to vector<8x128xf32>
    %65 = arith.addf %63, %64 : vector<8x128xf32>
    %cst_34 = arith.constant 5.000000e-01 : f32
    %66 = vector.broadcast %cst_34 : f32 to vector<8x128xf32>
    %67 = arith.mulf %66, %65 : vector<8x128xf32>
    %68 = math.tanh %67 : vector<8x128xf32>
    %cst_35 = arith.constant 5.000000e-01 : f32
    %69 = vector.broadcast %cst_35 : f32 to vector<8x128xf32>
    %70 = arith.mulf %69, %68 : vector<8x128xf32>
    %cst_36 = arith.constant 5.000000e-01 : f32
    %71 = vector.broadcast %cst_36 : f32 to vector<8x128xf32>
    %72 = arith.addf %70, %71 : vector<8x128xf32>
    %73 = vector.extract_strided_slice %62 {offsets = [0, 128], sizes = [8, 128], strides = [1, 1]} : vector<8x384xf32> to vector<8x128xf32>
    %74 = vector.extract_strided_slice %59 {offsets = [0, 128], sizes = [8, 128], strides = [1, 1]} : vector<8x384xf32> to vector<8x128xf32>
    %75 = arith.addf %73, %74 : vector<8x128xf32>
    %cst_37 = arith.constant 5.000000e-01 : f32
    %76 = vector.broadcast %cst_37 : f32 to vector<8x128xf32>
    %77 = arith.mulf %76, %75 : vector<8x128xf32>
    %78 = math.tanh %77 : vector<8x128xf32>
    %cst_38 = arith.constant 5.000000e-01 : f32
    %79 = vector.broadcast %cst_38 : f32 to vector<8x128xf32>
    %80 = arith.mulf %79, %78 : vector<8x128xf32>
    %cst_39 = arith.constant 5.000000e-01 : f32
    %81 = vector.broadcast %cst_39 : f32 to vector<8x128xf32>
    %82 = arith.addf %80, %81 : vector<8x128xf32>
    %83 = vector.extract_strided_slice %62 {offsets = [0, 256], sizes = [8, 128], strides = [1, 1]} : vector<8x384xf32> to vector<8x128xf32>
    %84 = vector.extract_strided_slice %59 {offsets = [0, 256], sizes = [8, 128], strides = [1, 1]} : vector<8x384xf32> to vector<8x128xf32>
    %85 = arith.addf %84, %14 : vector<8x128xf32>
    %86 = arith.mulf %72, %85 : vector<8x128xf32>
    %87 = arith.addf %83, %86 : vector<8x128xf32>
    %88 = math.tanh %87 : vector<8x128xf32>
    %cst_40 = arith.constant 1.000000e+00 : f32
    %89 = vector.broadcast %cst_40 : f32 to vector<8x128xf32>
    %90 = arith.subf %89, %82 : vector<8x128xf32>
    %91 = arith.mulf %90, %88 : vector<8x128xf32>
    %92 = arith.mulf %82, %52 : vector<8x128xf32>
    %93 = arith.addf %91, %92 : vector<8x128xf32>
    %94 = arith.index_cast %c1_i32 : i32 to index
    %c0_41 = arith.constant 0 : index
    %c0_42 = arith.constant 0 : index
    %95 = vector.load %arg8[%94, %c0_41, %c0_42] : memref<8x8x128xf32, #tpu.memory_space<vmem>>, vector<1x8x128xf32>
    %96 = vector.shape_cast %95 : vector<1x8x128xf32> to vector<8x128xf32>
    %97 = vector.shape_cast %93 : vector<8x128xf32> to vector<1x8x128xf32>
    tpu.vector_store %arg8[%94, %c0_41, %c0_42], %97 {strides = array<i32>} : memref<8x8x128xf32, #tpu.memory_space<vmem>>, vector<1x8x128xf32>,
    %c2_i32 = arith.constant 2 : i32
    %98 = arith.truncf %93 : vector<8x128xf32> to vector<8x128xbf16>
    %c0_43 = arith.constant 0 : index
    %c0_44 = arith.constant 0 : index
    %99 = vector.load %arg5[%c0_43, %c0_44] : memref<128x384xbf16, #tpu.memory_space<vmem>>, vector<128x384xbf16>
    %cst_45 = arith.constant dense<0.000000e+00> : vector<8x384xf32>
    %100 = tpu.matmul %98, %99, %cst_45 {dimension_numbers = #tpu.dot_dimension_numbers<[1], [0], [0], [1], [0, 0, 1, 1], [], []>} : vector<8x128xbf16>, vector<128x384xbf16>, vector<8x384xf32> -> vector<8x384xf32>
    %101 = arith.index_cast %c2_i32 : i32 to index
    %c0_46 = arith.constant 0 : index
    %c0_47 = arith.constant 0 : index
    %102 = vector.load %arg10[%101, %c0_46, %c0_47] : memref<8x8x384xf32, #tpu.memory_space<vmem>>, vector<1x8x384xf32>
    %103 = vector.shape_cast %102 : vector<1x8x384xf32> to vector<8x384xf32>
    %104 = vector.extract_strided_slice %103 {offsets = [0, 0], sizes = [8, 128], strides = [1, 1]} : vector<8x384xf32> to vector<8x128xf32>
    %105 = vector.extract_strided_slice %100 {offsets = [0, 0], sizes = [8, 128], strides = [1, 1]} : vector<8x384xf32> to vector<8x128xf32>
    %106 = arith.addf %104, %105 : vector<8x128xf32>
    %cst_48 = arith.constant 5.000000e-01 : f32
    %107 = vector.broadcast %cst_48 : f32 to vector<8x128xf32>
    %108 = arith.mulf %107, %106 : vector<8x128xf32>
    %109 = math.tanh %108 : vector<8x128xf32>
    %cst_49 = arith.constant 5.000000e-01 : f32
    %110 = vector.broadcast %cst_49 : f32 to vector<8x128xf32>
    %111 = arith.mulf %110, %109 : vector<8x128xf32>
    %cst_50 = arith.constant 5.000000e-01 : f32
    %112 = vector.broadcast %cst_50 : f32 to vector<8x128xf32>
    %113 = arith.addf %111, %112 : vector<8x128xf32>
    %114 = vector.extract_strided_slice %103 {offsets = [0, 128], sizes = [8, 128], strides = [1, 1]} : vector<8x384xf32> to vector<8x128xf32>
    %115 = vector.extract_strided_slice %100 {offsets = [0, 128], sizes = [8, 128], strides = [1, 1]} : vector<8x384xf32> to vector<8x128xf32>
    %116 = arith.addf %114, %115 : vector<8x128xf32>
    %cst_51 = arith.constant 5.000000e-01 : f32
    %117 = vector.broadcast %cst_51 : f32 to vector<8x128xf32>
    %118 = arith.mulf %117, %116 : vector<8x128xf32>
    %119 = math.tanh %118 : vector<8x128xf32>
    %cst_52 = arith.constant 5.000000e-01 : f32
    %120 = vector.broadcast %cst_52 : f32 to vector<8x128xf32>
    %121 = arith.mulf %120, %119 : vector<8x128xf32>
    %cst_53 = arith.constant 5.000000e-01 : f32
    %122 = vector.broadcast %cst_53 : f32 to vector<8x128xf32>
    %123 = arith.addf %121, %122 : vector<8x128xf32>
    %124 = vector.extract_strided_slice %103 {offsets = [0, 256], sizes = [8, 128], strides = [1, 1]} : vector<8x384xf32> to vector<8x128xf32>
    %125 = vector.extract_strided_slice %100 {offsets = [0, 256], sizes = [8, 128], strides = [1, 1]} : vector<8x384xf32> to vector<8x128xf32>
    %126 = arith.addf %125, %14 : vector<8x128xf32>
    %127 = arith.mulf %113, %126 : vector<8x128xf32>
    %128 = arith.addf %124, %127 : vector<8x128xf32>
    %129 = math.tanh %128 : vector<8x128xf32>
    %cst_54 = arith.constant 1.000000e+00 : f32
    %130 = vector.broadcast %cst_54 : f32 to vector<8x128xf32>
    %131 = arith.subf %130, %123 : vector<8x128xf32>
    %132 = arith.mulf %131, %129 : vector<8x128xf32>
    %133 = arith.mulf %123, %93 : vector<8x128xf32>
    %134 = arith.addf %132, %133 : vector<8x128xf32>
    %135 = arith.index_cast %c2_i32 : i32 to index
    %c0_55 = arith.constant 0 : index
    %c0_56 = arith.constant 0 : index
    %136 = vector.load %arg8[%135, %c0_55, %c0_56] : memref<8x8x128xf32, #tpu.memory_space<vmem>>, vector<1x8x128xf32>
    %137 = vector.shape_cast %136 : vector<1x8x128xf32> to vector<8x128xf32>
    %138 = vector.shape_cast %134 : vector<8x128xf32> to vector<1x8x128xf32>
    tpu.vector_store %arg8[%135, %c0_55, %c0_56], %138 {strides = array<i32>} : memref<8x8x128xf32, #tpu.memory_space<vmem>>, vector<1x8x128xf32>,
    %c3_i32 = arith.constant 3 : i32
    %139 = arith.truncf %134 : vector<8x128xf32> to vector<8x128xbf16>
    %c0_57 = arith.constant 0 : index
    %c0_58 = arith.constant 0 : index
    %140 = vector.load %arg5[%c0_57, %c0_58] : memref<128x384xbf16, #tpu.memory_space<vmem>>, vector<128x384xbf16>
    %cst_59 = arith.constant dense<0.000000e+00> : vector<8x384xf32>
    %141 = tpu.matmul %139, %140, %cst_59 {dimension_numbers = #tpu.dot_dimension_numbers<[1], [0], [0], [1], [0, 0, 1, 1], [], []>} : vector<8x128xbf16>, vector<128x384xbf16>, vector<8x384xf32> -> vector<8x384xf32>
    %142 = arith.index_cast %c3_i32 : i32 to index
    %c0_60 = arith.constant 0 : index
    %c0_61 = arith.constant 0 : index
    %143 = vector.load %arg10[%142, %c0_60, %c0_61] : memref<8x8x384xf32, #tpu.memory_space<vmem>>, vector<1x8x384xf32>
    %144 = vector.shape_cast %143 : vector<1x8x384xf32> to vector<8x384xf32>
    %145 = vector.extract_strided_slice %144 {offsets = [0, 0], sizes = [8, 128], strides = [1, 1]} : vector<8x384xf32> to vector<8x128xf32>
    %146 = vector.extract_strided_slice %141 {offsets = [0, 0], sizes = [8, 128], strides = [1, 1]} : vector<8x384xf32> to vector<8x128xf32>
    %147 = arith.addf %145, %146 : vector<8x128xf32>
    %cst_62 = arith.constant 5.000000e-01 : f32
    %148 = vector.broadcast %cst_62 : f32 to vector<8x128xf32>
    %149 = arith.mulf %148, %147 : vector<8x128xf32>
    %150 = math.tanh %149 : vector<8x128xf32>
    %cst_63 = arith.constant 5.000000e-01 : f32
    %151 = vector.broadcast %cst_63 : f32 to vector<8x128xf32>
    %152 = arith.mulf %151, %150 : vector<8x128xf32>
    %cst_64 = arith.constant 5.000000e-01 : f32
    %153 = vector.broadcast %cst_64 : f32 to vector<8x128xf32>
    %154 = arith.addf %152, %153 : vector<8x128xf32>
    %155 = vector.extract_strided_slice %144 {offsets = [0, 128], sizes = [8, 128], strides = [1, 1]} : vector<8x384xf32> to vector<8x128xf32>
    %156 = vector.extract_strided_slice %141 {offsets = [0, 128], sizes = [8, 128], strides = [1, 1]} : vector<8x384xf32> to vector<8x128xf32>
    %157 = arith.addf %155, %156 : vector<8x128xf32>
    %cst_65 = arith.constant 5.000000e-01 : f32
    %158 = vector.broadcast %cst_65 : f32 to vector<8x128xf32>
    %159 = arith.mulf %158, %157 : vector<8x128xf32>
    %160 = math.tanh %159 : vector<8x128xf32>
    %cst_66 = arith.constant 5.000000e-01 : f32
    %161 = vector.broadcast %cst_66 : f32 to vector<8x128xf32>
    %162 = arith.mulf %161, %160 : vector<8x128xf32>
    %cst_67 = arith.constant 5.000000e-01 : f32
    %163 = vector.broadcast %cst_67 : f32 to vector<8x128xf32>
    %164 = arith.addf %162, %163 : vector<8x128xf32>
    %165 = vector.extract_strided_slice %144 {offsets = [0, 256], sizes = [8, 128], strides = [1, 1]} : vector<8x384xf32> to vector<8x128xf32>
    %166 = vector.extract_strided_slice %141 {offsets = [0, 256], sizes = [8, 128], strides = [1, 1]} : vector<8x384xf32> to vector<8x128xf32>
    %167 = arith.addf %166, %14 : vector<8x128xf32>
    %168 = arith.mulf %154, %167 : vector<8x128xf32>
    %169 = arith.addf %165, %168 : vector<8x128xf32>
    %170 = math.tanh %169 : vector<8x128xf32>
    %cst_68 = arith.constant 1.000000e+00 : f32
    %171 = vector.broadcast %cst_68 : f32 to vector<8x128xf32>
    %172 = arith.subf %171, %164 : vector<8x128xf32>
    %173 = arith.mulf %172, %170 : vector<8x128xf32>
    %174 = arith.mulf %164, %134 : vector<8x128xf32>
    %175 = arith.addf %173, %174 : vector<8x128xf32>
    %176 = arith.index_cast %c3_i32 : i32 to index
    %c0_69 = arith.constant 0 : index
    %c0_70 = arith.constant 0 : index
    %177 = vector.load %arg8[%176, %c0_69, %c0_70] : memref<8x8x128xf32, #tpu.memory_space<vmem>>, vector<1x8x128xf32>
    %178 = vector.shape_cast %177 : vector<1x8x128xf32> to vector<8x128xf32>
    %179 = vector.shape_cast %175 : vector<8x128xf32> to vector<1x8x128xf32>
    tpu.vector_store %arg8[%176, %c0_69, %c0_70], %179 {strides = array<i32>} : memref<8x8x128xf32, #tpu.memory_space<vmem>>, vector<1x8x128xf32>,
    %c4_i32 = arith.constant 4 : i32
    %180 = arith.truncf %175 : vector<8x128xf32> to vector<8x128xbf16>
    %c0_71 = arith.constant 0 : index
    %c0_72 = arith.constant 0 : index
    %181 = vector.load %arg5[%c0_71, %c0_72] : memref<128x384xbf16, #tpu.memory_space<vmem>>, vector<128x384xbf16>
    %cst_73 = arith.constant dense<0.000000e+00> : vector<8x384xf32>
    %182 = tpu.matmul %180, %181, %cst_73 {dimension_numbers = #tpu.dot_dimension_numbers<[1], [0], [0], [1], [0, 0, 1, 1], [], []>} : vector<8x128xbf16>, vector<128x384xbf16>, vector<8x384xf32> -> vector<8x384xf32>
    %183 = arith.index_cast %c4_i32 : i32 to index
    %c0_74 = arith.constant 0 : index
    %c0_75 = arith.constant 0 : index
    %184 = vector.load %arg10[%183, %c0_74, %c0_75] : memref<8x8x384xf32, #tpu.memory_space<vmem>>, vector<1x8x384xf32>
    %185 = vector.shape_cast %184 : vector<1x8x384xf32> to vector<8x384xf32>
    %186 = vector.extract_strided_slice %185 {offsets = [0, 0], sizes = [8, 128], strides = [1, 1]} : vector<8x384xf32> to vector<8x128xf32>
    %187 = vector.extract_strided_slice %182 {offsets = [0, 0], sizes = [8, 128], strides = [1, 1]} : vector<8x384xf32> to vector<8x128xf32>
    %188 = arith.addf %186, %187 : vector<8x128xf32>
    %cst_76 = arith.constant 5.000000e-01 : f32
    %189 = vector.broadcast %cst_76 : f32 to vector<8x128xf32>
    %190 = arith.mulf %189, %188 : vector<8x128xf32>
    %191 = math.tanh %190 : vector<8x128xf32>
    %cst_77 = arith.constant 5.000000e-01 : f32
    %192 = vector.broadcast %cst_77 : f32 to vector<8x128xf32>
    %193 = arith.mulf %192, %191 : vector<8x128xf32>
    %cst_78 = arith.constant 5.000000e-01 : f32
    %194 = vector.broadcast %cst_78 : f32 to vector<8x128xf32>
    %195 = arith.addf %193, %194 : vector<8x128xf32>
    %196 = vector.extract_strided_slice %185 {offsets = [0, 128], sizes = [8, 128], strides = [1, 1]} : vector<8x384xf32> to vector<8x128xf32>
    %197 = vector.extract_strided_slice %182 {offsets = [0, 128], sizes = [8, 128], strides = [1, 1]} : vector<8x384xf32> to vector<8x128xf32>
    %198 = arith.addf %196, %197 : vector<8x128xf32>
    %cst_79 = arith.constant 5.000000e-01 : f32
    %199 = vector.broadcast %cst_79 : f32 to vector<8x128xf32>
    %200 = arith.mulf %199, %198 : vector<8x128xf32>
    %201 = math.tanh %200 : vector<8x128xf32>
    %cst_80 = arith.constant 5.000000e-01 : f32
    %202 = vector.broadcast %cst_80 : f32 to vector<8x128xf32>
    %203 = arith.mulf %202, %201 : vector<8x128xf32>
    %cst_81 = arith.constant 5.000000e-01 : f32
    %204 = vector.broadcast %cst_81 : f32 to vector<8x128xf32>
    %205 = arith.addf %203, %204 : vector<8x128xf32>
    %206 = vector.extract_strided_slice %185 {offsets = [0, 256], sizes = [8, 128], strides = [1, 1]} : vector<8x384xf32> to vector<8x128xf32>
    %207 = vector.extract_strided_slice %182 {offsets = [0, 256], sizes = [8, 128], strides = [1, 1]} : vector<8x384xf32> to vector<8x128xf32>
    %208 = arith.addf %207, %14 : vector<8x128xf32>
    %209 = arith.mulf %195, %208 : vector<8x128xf32>
    %210 = arith.addf %206, %209 : vector<8x128xf32>
    %211 = math.tanh %210 : vector<8x128xf32>
    %cst_82 = arith.constant 1.000000e+00 : f32
    %212 = vector.broadcast %cst_82 : f32 to vector<8x128xf32>
    %213 = arith.subf %212, %205 : vector<8x128xf32>
    %214 = arith.mulf %213, %211 : vector<8x128xf32>
    %215 = arith.mulf %205, %175 : vector<8x128xf32>
    %216 = arith.addf %214, %215 : vector<8x128xf32>
    %217 = arith.index_cast %c4_i32 : i32 to index
    %c0_83 = arith.constant 0 : index
    %c0_84 = arith.constant 0 : index
    %218 = vector.load %arg8[%217, %c0_83, %c0_84] : memref<8x8x128xf32, #tpu.memory_space<vmem>>, vector<1x8x128xf32>
    %219 = vector.shape_cast %218 : vector<1x8x128xf32> to vector<8x128xf32>
    %220 = vector.shape_cast %216 : vector<8x128xf32> to vector<1x8x128xf32>
    tpu.vector_store %arg8[%217, %c0_83, %c0_84], %220 {strides = array<i32>} : memref<8x8x128xf32, #tpu.memory_space<vmem>>, vector<1x8x128xf32>,
    %c5_i32 = arith.constant 5 : i32
    %221 = arith.truncf %216 : vector<8x128xf32> to vector<8x128xbf16>
    %c0_85 = arith.constant 0 : index
    %c0_86 = arith.constant 0 : index
    %222 = vector.load %arg5[%c0_85, %c0_86] : memref<128x384xbf16, #tpu.memory_space<vmem>>, vector<128x384xbf16>
    %cst_87 = arith.constant dense<0.000000e+00> : vector<8x384xf32>
    %223 = tpu.matmul %221, %222, %cst_87 {dimension_numbers = #tpu.dot_dimension_numbers<[1], [0], [0], [1], [0, 0, 1, 1], [], []>} : vector<8x128xbf16>, vector<128x384xbf16>, vector<8x384xf32> -> vector<8x384xf32>
    %224 = arith.index_cast %c5_i32 : i32 to index
    %c0_88 = arith.constant 0 : index
    %c0_89 = arith.constant 0 : index
    %225 = vector.load %arg10[%224, %c0_88, %c0_89] : memref<8x8x384xf32, #tpu.memory_space<vmem>>, vector<1x8x384xf32>
    %226 = vector.shape_cast %225 : vector<1x8x384xf32> to vector<8x384xf32>
    %227 = vector.extract_strided_slice %226 {offsets = [0, 0], sizes = [8, 128], strides = [1, 1]} : vector<8x384xf32> to vector<8x128xf32>
    %228 = vector.extract_strided_slice %223 {offsets = [0, 0], sizes = [8, 128], strides = [1, 1]} : vector<8x384xf32> to vector<8x128xf32>
    %229 = arith.addf %227, %228 : vector<8x128xf32>
    %cst_90 = arith.constant 5.000000e-01 : f32
    %230 = vector.broadcast %cst_90 : f32 to vector<8x128xf32>
    %231 = arith.mulf %230, %229 : vector<8x128xf32>
    %232 = math.tanh %231 : vector<8x128xf32>
    %cst_91 = arith.constant 5.000000e-01 : f32
    %233 = vector.broadcast %cst_91 : f32 to vector<8x128xf32>
    %234 = arith.mulf %233, %232 : vector<8x128xf32>
    %cst_92 = arith.constant 5.000000e-01 : f32
    %235 = vector.broadcast %cst_92 : f32 to vector<8x128xf32>
    %236 = arith.addf %234, %235 : vector<8x128xf32>
    %237 = vector.extract_strided_slice %226 {offsets = [0, 128], sizes = [8, 128], strides = [1, 1]} : vector<8x384xf32> to vector<8x128xf32>
    %238 = vector.extract_strided_slice %223 {offsets = [0, 128], sizes = [8, 128], strides = [1, 1]} : vector<8x384xf32> to vector<8x128xf32>
    %239 = arith.addf %237, %238 : vector<8x128xf32>
    %cst_93 = arith.constant 5.000000e-01 : f32
    %240 = vector.broadcast %cst_93 : f32 to vector<8x128xf32>
    %241 = arith.mulf %240, %239 : vector<8x128xf32>
    %242 = math.tanh %241 : vector<8x128xf32>
    %cst_94 = arith.constant 5.000000e-01 : f32
    %243 = vector.broadcast %cst_94 : f32 to vector<8x128xf32>
    %244 = arith.mulf %243, %242 : vector<8x128xf32>
    %cst_95 = arith.constant 5.000000e-01 : f32
    %245 = vector.broadcast %cst_95 : f32 to vector<8x128xf32>
    %246 = arith.addf %244, %245 : vector<8x128xf32>
    %247 = vector.extract_strided_slice %226 {offsets = [0, 256], sizes = [8, 128], strides = [1, 1]} : vector<8x384xf32> to vector<8x128xf32>
    %248 = vector.extract_strided_slice %223 {offsets = [0, 256], sizes = [8, 128], strides = [1, 1]} : vector<8x384xf32> to vector<8x128xf32>
    %249 = arith.addf %248, %14 : vector<8x128xf32>
    %250 = arith.mulf %236, %249 : vector<8x128xf32>
    %251 = arith.addf %247, %250 : vector<8x128xf32>
    %252 = math.tanh %251 : vector<8x128xf32>
    %cst_96 = arith.constant 1.000000e+00 : f32
    %253 = vector.broadcast %cst_96 : f32 to vector<8x128xf32>
    %254 = arith.subf %253, %246 : vector<8x128xf32>
    %255 = arith.mulf %254, %252 : vector<8x128xf32>
    %256 = arith.mulf %246, %216 : vector<8x128xf32>
    %257 = arith.addf %255, %256 : vector<8x128xf32>
    %258 = arith.index_cast %c5_i32 : i32 to index
    %c0_97 = arith.constant 0 : index
    %c0_98 = arith.constant 0 : index
    %259 = vector.load %arg8[%258, %c0_97, %c0_98] : memref<8x8x128xf32, #tpu.memory_space<vmem>>, vector<1x8x128xf32>
    %260 = vector.shape_cast %259 : vector<1x8x128xf32> to vector<8x128xf32>
    %261 = vector.shape_cast %257 : vector<8x128xf32> to vector<1x8x128xf32>
    tpu.vector_store %arg8[%258, %c0_97, %c0_98], %261 {strides = array<i32>} : memref<8x8x128xf32, #tpu.memory_space<vmem>>, vector<1x8x128xf32>,
    %c6_i32 = arith.constant 6 : i32
    %262 = arith.truncf %257 : vector<8x128xf32> to vector<8x128xbf16>
    %c0_99 = arith.constant 0 : index
    %c0_100 = arith.constant 0 : index
    %263 = vector.load %arg5[%c0_99, %c0_100] : memref<128x384xbf16, #tpu.memory_space<vmem>>, vector<128x384xbf16>
    %cst_101 = arith.constant dense<0.000000e+00> : vector<8x384xf32>
    %264 = tpu.matmul %262, %263, %cst_101 {dimension_numbers = #tpu.dot_dimension_numbers<[1], [0], [0], [1], [0, 0, 1, 1], [], []>} : vector<8x128xbf16>, vector<128x384xbf16>, vector<8x384xf32> -> vector<8x384xf32>
    %265 = arith.index_cast %c6_i32 : i32 to index
    %c0_102 = arith.constant 0 : index
    %c0_103 = arith.constant 0 : index
    %266 = vector.load %arg10[%265, %c0_102, %c0_103] : memref<8x8x384xf32, #tpu.memory_space<vmem>>, vector<1x8x384xf32>
    %267 = vector.shape_cast %266 : vector<1x8x384xf32> to vector<8x384xf32>
    %268 = vector.extract_strided_slice %267 {offsets = [0, 0], sizes = [8, 128], strides = [1, 1]} : vector<8x384xf32> to vector<8x128xf32>
    %269 = vector.extract_strided_slice %264 {offsets = [0, 0], sizes = [8, 128], strides = [1, 1]} : vector<8x384xf32> to vector<8x128xf32>
    %270 = arith.addf %268, %269 : vector<8x128xf32>
    %cst_104 = arith.constant 5.000000e-01 : f32
    %271 = vector.broadcast %cst_104 : f32 to vector<8x128xf32>
    %272 = arith.mulf %271, %270 : vector<8x128xf32>
    %273 = math.tanh %272 : vector<8x128xf32>
    %cst_105 = arith.constant 5.000000e-01 : f32
    %274 = vector.broadcast %cst_105 : f32 to vector<8x128xf32>
    %275 = arith.mulf %274, %273 : vector<8x128xf32>
    %cst_106 = arith.constant 5.000000e-01 : f32
    %276 = vector.broadcast %cst_106 : f32 to vector<8x128xf32>
    %277 = arith.addf %275, %276 : vector<8x128xf32>
    %278 = vector.extract_strided_slice %267 {offsets = [0, 128], sizes = [8, 128], strides = [1, 1]} : vector<8x384xf32> to vector<8x128xf32>
    %279 = vector.extract_strided_slice %264 {offsets = [0, 128], sizes = [8, 128], strides = [1, 1]} : vector<8x384xf32> to vector<8x128xf32>
    %280 = arith.addf %278, %279 : vector<8x128xf32>
    %cst_107 = arith.constant 5.000000e-01 : f32
    %281 = vector.broadcast %cst_107 : f32 to vector<8x128xf32>
    %282 = arith.mulf %281, %280 : vector<8x128xf32>
    %283 = math.tanh %282 : vector<8x128xf32>
    %cst_108 = arith.constant 5.000000e-01 : f32
    %284 = vector.broadcast %cst_108 : f32 to vector<8x128xf32>
    %285 = arith.mulf %284, %283 : vector<8x128xf32>
    %cst_109 = arith.constant 5.000000e-01 : f32
    %286 = vector.broadcast %cst_109 : f32 to vector<8x128xf32>
    %287 = arith.addf %285, %286 : vector<8x128xf32>
    %288 = vector.extract_strided_slice %267 {offsets = [0, 256], sizes = [8, 128], strides = [1, 1]} : vector<8x384xf32> to vector<8x128xf32>
    %289 = vector.extract_strided_slice %264 {offsets = [0, 256], sizes = [8, 128], strides = [1, 1]} : vector<8x384xf32> to vector<8x128xf32>
    %290 = arith.addf %289, %14 : vector<8x128xf32>
    %291 = arith.mulf %277, %290 : vector<8x128xf32>
    %292 = arith.addf %288, %291 : vector<8x128xf32>
    %293 = math.tanh %292 : vector<8x128xf32>
    %cst_110 = arith.constant 1.000000e+00 : f32
    %294 = vector.broadcast %cst_110 : f32 to vector<8x128xf32>
    %295 = arith.subf %294, %287 : vector<8x128xf32>
    %296 = arith.mulf %295, %293 : vector<8x128xf32>
    %297 = arith.mulf %287, %257 : vector<8x128xf32>
    %298 = arith.addf %296, %297 : vector<8x128xf32>
    %299 = arith.index_cast %c6_i32 : i32 to index
    %c0_111 = arith.constant 0 : index
    %c0_112 = arith.constant 0 : index
    %300 = vector.load %arg8[%299, %c0_111, %c0_112] : memref<8x8x128xf32, #tpu.memory_space<vmem>>, vector<1x8x128xf32>
    %301 = vector.shape_cast %300 : vector<1x8x128xf32> to vector<8x128xf32>
    %302 = vector.shape_cast %298 : vector<8x128xf32> to vector<1x8x128xf32>
    tpu.vector_store %arg8[%299, %c0_111, %c0_112], %302 {strides = array<i32>} : memref<8x8x128xf32, #tpu.memory_space<vmem>>, vector<1x8x128xf32>,
    %c7_i32 = arith.constant 7 : i32
    %303 = arith.truncf %298 : vector<8x128xf32> to vector<8x128xbf16>
    %c0_113 = arith.constant 0 : index
    %c0_114 = arith.constant 0 : index
    %304 = vector.load %arg5[%c0_113, %c0_114] : memref<128x384xbf16, #tpu.memory_space<vmem>>, vector<128x384xbf16>
    %cst_115 = arith.constant dense<0.000000e+00> : vector<8x384xf32>
    %305 = tpu.matmul %303, %304, %cst_115 {dimension_numbers = #tpu.dot_dimension_numbers<[1], [0], [0], [1], [0, 0, 1, 1], [], []>} : vector<8x128xbf16>, vector<128x384xbf16>, vector<8x384xf32> -> vector<8x384xf32>
    %306 = arith.index_cast %c7_i32 : i32 to index
    %c0_116 = arith.constant 0 : index
    %c0_117 = arith.constant 0 : index
    %307 = vector.load %arg10[%306, %c0_116, %c0_117] : memref<8x8x384xf32, #tpu.memory_space<vmem>>, vector<1x8x384xf32>
    %308 = vector.shape_cast %307 : vector<1x8x384xf32> to vector<8x384xf32>
    %309 = vector.extract_strided_slice %308 {offsets = [0, 0], sizes = [8, 128], strides = [1, 1]} : vector<8x384xf32> to vector<8x128xf32>
    %310 = vector.extract_strided_slice %305 {offsets = [0, 0], sizes = [8, 128], strides = [1, 1]} : vector<8x384xf32> to vector<8x128xf32>
    %311 = arith.addf %309, %310 : vector<8x128xf32>
    %cst_118 = arith.constant 5.000000e-01 : f32
    %312 = vector.broadcast %cst_118 : f32 to vector<8x128xf32>
    %313 = arith.mulf %312, %311 : vector<8x128xf32>
    %314 = math.tanh %313 : vector<8x128xf32>
    %cst_119 = arith.constant 5.000000e-01 : f32
    %315 = vector.broadcast %cst_119 : f32 to vector<8x128xf32>
    %316 = arith.mulf %315, %314 : vector<8x128xf32>
    %cst_120 = arith.constant 5.000000e-01 : f32
    %317 = vector.broadcast %cst_120 : f32 to vector<8x128xf32>
    %318 = arith.addf %316, %317 : vector<8x128xf32>
    %319 = vector.extract_strided_slice %308 {offsets = [0, 128], sizes = [8, 128], strides = [1, 1]} : vector<8x384xf32> to vector<8x128xf32>
    %320 = vector.extract_strided_slice %305 {offsets = [0, 128], sizes = [8, 128], strides = [1, 1]} : vector<8x384xf32> to vector<8x128xf32>
    %321 = arith.addf %319, %320 : vector<8x128xf32>
    %cst_121 = arith.constant 5.000000e-01 : f32
    %322 = vector.broadcast %cst_121 : f32 to vector<8x128xf32>
    %323 = arith.mulf %322, %321 : vector<8x128xf32>
    %324 = math.tanh %323 : vector<8x128xf32>
    %cst_122 = arith.constant 5.000000e-01 : f32
    %325 = vector.broadcast %cst_122 : f32 to vector<8x128xf32>
    %326 = arith.mulf %325, %324 : vector<8x128xf32>
    %cst_123 = arith.constant 5.000000e-01 : f32
    %327 = vector.broadcast %cst_123 : f32 to vector<8x128xf32>
    %328 = arith.addf %326, %327 : vector<8x128xf32>
    %329 = vector.extract_strided_slice %308 {offsets = [0, 256], sizes = [8, 128], strides = [1, 1]} : vector<8x384xf32> to vector<8x128xf32>
    %330 = vector.extract_strided_slice %305 {offsets = [0, 256], sizes = [8, 128], strides = [1, 1]} : vector<8x384xf32> to vector<8x128xf32>
    %331 = arith.addf %330, %14 : vector<8x128xf32>
    %332 = arith.mulf %318, %331 : vector<8x128xf32>
    %333 = arith.addf %329, %332 : vector<8x128xf32>
    %334 = math.tanh %333 : vector<8x128xf32>
    %cst_124 = arith.constant 1.000000e+00 : f32
    %335 = vector.broadcast %cst_124 : f32 to vector<8x128xf32>
    %336 = arith.subf %335, %328 : vector<8x128xf32>
    %337 = arith.mulf %336, %334 : vector<8x128xf32>
    %338 = arith.mulf %328, %298 : vector<8x128xf32>
    %339 = arith.addf %337, %338 : vector<8x128xf32>
    %340 = arith.index_cast %c7_i32 : i32 to index
    %c0_125 = arith.constant 0 : index
    %c0_126 = arith.constant 0 : index
    %341 = vector.load %arg8[%340, %c0_125, %c0_126] : memref<8x8x128xf32, #tpu.memory_space<vmem>>, vector<1x8x128xf32>
    %342 = vector.shape_cast %341 : vector<1x8x128xf32> to vector<8x128xf32>
    %343 = vector.shape_cast %339 : vector<8x128xf32> to vector<1x8x128xf32>
    tpu.vector_store %arg8[%340, %c0_125, %c0_126], %343 {strides = array<i32>} : memref<8x8x128xf32, #tpu.memory_space<vmem>>, vector<1x8x128xf32>,
    %c8_i32 = arith.constant 8 : i32
    %c0_127 = arith.constant 0 : index
    %c0_128 = arith.constant 0 : index
    %344 = vector.load %arg9[%c0_127, %c0_128] : memref<8x128xf32, #tpu.memory_space<vmem>>, vector<8x128xf32>
    tpu.vector_store %arg9[%c0_127, %c0_128], %339 {strides = array<i32>} : memref<8x128xf32, #tpu.memory_space<vmem>>, vector<8x128xf32>,
    return
  }
  func.func @transform_0(%arg0: i32, %arg1: i32) -> (i32, i32, i32) {
    %c0_i32 = arith.constant 0 : i32
    %c0_i32_0 = arith.constant 0 : i32
    return %arg1, %arg0, %c0_i32 : i32, i32, i32
  }
  func.func @transform_1(%arg0: i32, %arg1: i32) -> (i32, i32) {
    %c0_i32 = arith.constant 0 : i32
    %c0_i32_0 = arith.constant 0 : i32
    return %arg0, %c0_i32 : i32, i32
  }
  func.func @transform_2(%arg0: i32, %arg1: i32) -> (i32, i32) {
    %c0_i32 = arith.constant 0 : i32
    %c0_i32_0 = arith.constant 0 : i32
    %c0_i32_1 = arith.constant 0 : i32
    return %c0_i32, %c0_i32_0 : i32, i32
  }
  func.func @transform_3(%arg0: i32, %arg1: i32) -> (i32, i32) {
    %c0_i32 = arith.constant 0 : i32
    %c0_i32_0 = arith.constant 0 : i32
    %c0_i32_1 = arith.constant 0 : i32
    return %c0_i32, %c0_i32_0 : i32, i32
  }
  func.func @transform_4(%arg0: i32, %arg1: i32) -> (i32, i32) {
    %c0_i32 = arith.constant 0 : i32
    %c0_i32_0 = arith.constant 0 : i32
    %c0_i32_1 = arith.constant 0 : i32
    return %c0_i32, %c0_i32_0 : i32, i32
  }
  func.func @transform_5(%arg0: i32, %arg1: i32) -> (i32, i32) {
    %c0_i32 = arith.constant 0 : i32
    %c0_i32_0 = arith.constant 0 : i32
    %c0_i32_1 = arith.constant 0 : i32
    return %c0_i32, %c0_i32_0 : i32, i32
  }
  func.func @transform_6(%arg0: i32, %arg1: i32) -> (i32, i32, i32) {
    %c0_i32 = arith.constant 0 : i32
    %c0_i32_0 = arith.constant 0 : i32
    return %arg1, %arg0, %c0_i32 : i32, i32, i32
  }
}

</mosaic_0001>

<llo_original>
// kernel: tpu_custom_call.1
$region0: #{tpu_custom_call.1}
  #allocation0 [shape = 'u32[]', space=smem, size = 0x4, offset = 0x4, fixed_abs, tag = 'smem constant byte address 0x4 - core index']
  #allocation1 [shape = 'u32[72,128]{1,0:T(1,128)}', space=vmem, size = 0x9000, scoped, tag = 'internal scratch']
  #allocation2 [shape = 'f32[8,128]{1,0:T(8,128)}', space=vmem, size = 0x1000, scoped, tag = 'scratch operand']
  #allocation3 [shape = 'f32[8,8,384]{2,1,0:T(8,128)}', space=vmem, size = 0x18000, scoped, tag = 'scratch operand']
  %s0 = inlined_call_operand.hbm [shape: bf16[8,8,16], index: 0, kind: input, shape index: {}]
  %s1 = inlined_call_operand.hbm [shape: f32[8,128], index: 1, kind: input, shape index: {}]
  %s2 = inlined_call_operand.hbm [shape: bf16[16,384], index: 2, kind: input, shape index: {}]
  %s3 = inlined_call_operand.hbm [shape: bf16[128,384], index: 3, kind: input, shape index: {}]
  %s4 = inlined_call_operand.vmem [shape: f32[1,384], index: 4, kind: input, shape index: {}]
  %s5 = inlined_call_operand.vmem [shape: f32[1,128], index: 5, kind: input, shape index: {}]
  %s6 = inlined_call_operand.hbm [shape: f32[8,8,128], index: 6, kind: output, shape index: {}]
  %s7 = sld [smem:[#allocation0]]
  $region54: #{tpu_custom_call.1} parent=0
    _
  %s9 = ssub.s32 1, %s7
  %s10 = scalar_select 0, %s9, %s7
  $region1: #{tpu_custom_call.1} parent=0
    #allocation4 [shape = 'u8[16384]{0}', space=vmem, size = 0x4000, scoped, tag = 'input window, operand 0, single buffered']
    #allocation5 [shape = 's32[1]{0}', space=sflag, size = 0x4, scoped, tag = 'scoped memory for tpu_custom_call.1']
    #allocation6 [shape = 's32[1]{0}', space=sflag, size = 0x4, scoped, tag = 'scoped memory for tpu_custom_call.1']
    #allocation7 [shape = 'u8[4096]{0}', space=vmem, size = 0x1000, scoped, tag = 'input window, operand 1, single buffered']
    #allocation8 [shape = 's32[1]{0}', space=sflag, size = 0x4, scoped, tag = 'scoped memory for tpu_custom_call.1']
    #allocation9 [shape = 'u8[12288]{0}', space=vmem, size = 0x3000, scoped, tag = 'input window, operand 2, single buffered']
    #allocation10 [shape = 'u8[98304]{0}', space=vmem, size = 0x18000, scoped, tag = 'input window, operand 3, single buffered']
    #allocation11 [shape = 's32[1]{0}', space=sflag, size = 0x4, scoped, tag = 'scoped memory for tpu_custom_call.1']
    #allocation12 [shape = 'u8[32768]{0}', space=vmem, size = 0x8000, scoped, tag = 'output window, operand 0, single buffered']
    %11 = vsyncpa [#allocation5], 0
    %12 = vsyncpa [#allocation8], 0
    %13 = vsyncpa [#allocation11], 0
    %14 = vsyncpa [#allocation6], 0
    // Predicated region
    $region2: #{tpu_custom_call.1} parent=1 // pred_check
      _
    $region3: #{tpu_custom_call.1} parent=1 // pred_check_branch
      %16 = sbr.rel (0) target = $region5
    $region4: #{tpu_custom_call.1} parent=1 // pred_region
      %18 = vsyncadd [#allocation5], 0
      %s19 = sshll.u32 %s0, 4
      %s20 = int_to_ptr.hbm [resolvable:$true] %s19
      %s21 = sshll.u32 [#allocation4], 4
      %s22 = int_to_ptr.vmem [resolvable:$true] %s21
      %27 = dma.hbm_to_vmem [thread:$0]  %s20, 512, %s22, [#allocation5], 64, 64, 4
    $region5: #{tpu_custom_call.1} parent=1 // pred_fallthru
      _
    // Predicated region
    $region6: #{tpu_custom_call.1} parent=1 // pred_check
      _
    $region7: #{tpu_custom_call.1} parent=1 // pred_check_branch
      %29 = sbr.rel (0) target = $region9
    $region8: #{tpu_custom_call.1} parent=1 // pred_region
      %31 = vsyncadd [#allocation8], 0
      %s33 = sshll.u32 %s1, 4
      %s34 = int_to_ptr.hbm [resolvable:$true] %s33
      %s35 = sshll.u32 [#allocation7], 4
      %s36 = int_to_ptr.vmem [resolvable:$true] %s35
      %38 = dma.hbm_to_vmem [thread:$0]  %s34, 128, %s36, [#allocation8]
    $region9: #{tpu_custom_call.1} parent=1 // pred_fallthru
      _
    // Predicated region
    $region10: #{tpu_custom_call.1} parent=1 // pred_check
      _
    $region11: #{tpu_custom_call.1} parent=1 // pred_check_branch
      %40 = sbr.rel (0) target = $region13
    $region12: #{tpu_custom_call.1} parent=1 // pred_region
      %42 = vsyncadd [#allocation8], 0
      %s43 = sshll.u32 %s2, 4
      %s44 = int_to_ptr.hbm [resolvable:$true] %s43
      %s45 = sshll.u32 [#allocation9], 4
      %s46 = int_to_ptr.vmem [resolvable:$true] %s45
      %51 = dma.hbm_to_vmem [thread:$0]  %s44, 384, %s46, [#allocation8], 192, 192, 12
    $region13: #{tpu_custom_call.1} parent=1 // pred_fallthru
      _
    // Predicated region
    $region14: #{tpu_custom_call.1} parent=1 // pred_check
      _
    $region15: #{tpu_custom_call.1} parent=1 // pred_check_branch
      %53 = sbr.rel (0) target = $region17
    $region16: #{tpu_custom_call.1} parent=1 // pred_region
      %55 = vsyncadd [#allocation11], 0
      %s56 = sshll.u32 %s3, 4
      %s57 = int_to_ptr.hbm [resolvable:$true] %s56
      %s58 = sshll.u32 [#allocation10], 4
      %s59 = int_to_ptr.vmem [resolvable:$true] %s58
      %64 = dma.hbm_to_vmem [thread:$0]  %s57, 3072, %s59, [#allocation11], 192, 192, 12
    $region17: #{tpu_custom_call.1} parent=1 // pred_fallthru
      _
    // Predicated region
    $region18: #{tpu_custom_call.1} parent=1 // pred_check
      _
    $region19: #{tpu_custom_call.1} parent=1 // pred_check_branch
      %66 = sbr.rel (0) target = $region21
    $region20: #{tpu_custom_call.1} parent=1 // pred_region
      _
    $region21: #{tpu_custom_call.1} parent=1 // pred_fallthru
      _
    // Predicated region
    $region22: #{tpu_custom_call.1} parent=1 // pred_check
      _
    $region23: #{tpu_custom_call.1} parent=1 // pred_check_branch
      %68 = sbr.rel (0) target = $region25
    $region24: #{tpu_custom_call.1} parent=1 // pred_region
      _
    $region25: #{tpu_custom_call.1} parent=1 // pred_fallthru
      _
    // Predicated region
    $region26: #{tpu_custom_call.1} parent=1 // pred_check
      _
    $region27: #{tpu_custom_call.1} parent=1 // pred_check_branch
      %70 = sbr.rel (0) target = $region29
    $region28: #{tpu_custom_call.1} parent=1 // pred_region
      %72 = dma.done [#allocation5], 512
    $region29: #{tpu_custom_call.1} parent=1 // pred_fallthru
      _
    // Predicated region
    $region30: #{tpu_custom_call.1} parent=1 // pred_check
      _
    $region31: #{tpu_custom_call.1} parent=1 // pred_check_branch
      %74 = sbr.rel (0) target = $region33
    $region32: #{tpu_custom_call.1} parent=1 // pred_region
      %76 = dma.done [#allocation8], 128
    $region33: #{tpu_custom_call.1} parent=1 // pred_fallthru
      _
    // Predicated region
    $region34: #{tpu_custom_call.1} parent=1 // pred_check
      _
    $region35: #{tpu_custom_call.1} parent=1 // pred_check_branch
      %78 = sbr.rel (0) target = $region37
    $region36: #{tpu_custom_call.1} parent=1 // pred_region
      %80 = dma.done [#allocation8], 384
    $region37: #{tpu_custom_call.1} parent=1 // pred_fallthru
      _
    // Predicated region
    $region38: #{tpu_custom_call.1} parent=1 // pred_check
      _
    $region39: #{tpu_custom_call.1} parent=1 // pred_check_branch
      %82 = sbr.rel (0) target = $region41
    $region40: #{tpu_custom_call.1} parent=1 // pred_region
      %84 = dma.done [#allocation11], 3072
    $region41: #{tpu_custom_call.1} parent=1 // pred_fallthru
      _
    %p86 = scmp.eq.s32.totalorder 0, 0
    // Predicated region
    $region42: #{tpu_custom_call.1} parent=1 // pred_check
      %p87 = pneg %p86
    $region43: #{tpu_custom_call.1} parent=1 // pred_check_branch
      %89 = sbr.rel (%p87) target = $region45
    $region44: #{tpu_custom_call.1} parent=1 // pred_region
      %v90 = vld [vmem:[#allocation7] sm:$0xff]
      %91 = vst [vmem:[#allocation2] sm:$0xff] %v90
    $region45: #{tpu_custom_call.1} parent=1 // pred_fallthru
      _
    %v92 = vld [vmem:[#allocation4] sm:$0xf]
    %v93 = vld [vmem:[#allocation4 + $0x4] sm:$0xf]
    %v94 = vld [vmem:[#allocation4 + $0x8] sm:$0xf]
    %v95 = vld [vmem:[#allocation4 + $0xc] sm:$0xf]
    %v96 = vld [vmem:[#allocation4 + $0x10] sm:$0xf]
    %v97 = vld [vmem:[#allocation4 + $0x14] sm:$0xf]
    %v98 = vld [vmem:[#allocation4 + $0x18] sm:$0xf]
    %v99 = vld [vmem:[#allocation4 + $0x1c] sm:$0xf]
    %v100 = vld [vmem:[#allocation9] sm:$0xff]
    %v101 = vld [vmem:[#allocation9 + $0x8] sm:$0xf]
    %v102 = vld [vmem:[#allocation9 + $0xc] sm:$0xff]
    %v103 = vld [vmem:[#allocation9 + $0x14] sm:$0xf]
    %v104 = vld [vmem:[%s4] sm:$0x7]
    %v106 = vperm.slane %v104, 0
    %v107 = vperm.slane %v104, 1
    %v108 = vperm.slane %v104, 2
    %v120 = vunpack.c.l.b16 %v92
    %v121 = vunpack.c.l.b16 %v93
    %v122 = vunpack.c.l.b16 %v94
    %v123 = vunpack.c.l.b16 %v95
    %v124 = vunpack.c.l.b16 %v96
    %v125 = vunpack.c.l.b16 %v97
    %v126 = vunpack.c.l.b16 %v98
    %v127 = vunpack.c.l.b16 %v99
    %v128 = vpack.c.b16 %v121, %v120
    %v129 = vpack.c.b16 %v123, %v122
    %v130 = vpack.c.b16 %v125, %v124
    %v131 = vpack.c.b16 %v127, %v126
    %v136 = vunpack.c.l.b16 %v100
    %v137 = vunpack.c.h.b16 %v100
    %v138 = vunpack.c.l.b16 %v101
    %v139 = vunpack.c.l.b16 %v102
    %v140 = vunpack.c.h.b16 %v102
    %v141 = vunpack.c.l.b16 %v103
    %v142 = vpack.c.b16 %v139, %v136
    %v143 = vpack.c.b16 %v140, %v137
    %v144 = vpack.c.b16 %v141, %v138
    %vm148 = vcmask 130048
    %v150 = vsel %vm148, %v128, 0
    %v153 = vsel %vm148, %v129, 0
    %v156 = vsel %vm148, %v130, 0
    %v159 = vsel %vm148, %v131, 0
    %161 = vmatpush.bf16.msra.mxu0 0
    %162 = vmatpush.bf16.msra.mxu0 0
    %163 = vmatpush.bf16.msra.mxu0 0
    %164 = vmatpush.bf16.msra.mxu0 0
    %165 = vmatpush.bf16.msra.mxu0 0
    %166 = vmatpush.bf16.msra.mxu0 0
    %167 = vmatpush.bf16.msra.mxu0 0
    %168 = vmatpush.bf16.msra.mxu0 %v142
    %169 = vmatmul.bf16.gmra.mxu0 %v150
    %v170 = vpop.f32.mrf.mxu0
    %v171 = vadd.f32 %v106, %v170
    %v172 = vpop.f32.mrf.mxu0
    %v173 = vadd.f32 %v106, %v172
    %174 = vmatmul.bf16.gmra.mxu0 %v153
    %v175 = vpop.f32.mrf.mxu0
    %v176 = vadd.f32 %v106, %v175
    %v177 = vpop.f32.mrf.mxu0
    %v178 = vadd.f32 %v106, %v177
    %179 = vmatmul.bf16.gmra.mxu0 %v156
    %v180 = vpop.f32.mrf.mxu0
    %v181 = vadd.f32 %v106, %v180
    %v182 = vpop.f32.mrf.mxu0
    %v183 = vadd.f32 %v106, %v182
    %184 = vmatmul.bf16.gmra.mxu0 %v159
    %v185 = vpop.f32.mrf.mxu0
    %v186 = vadd.f32 %v106, %v185
    %v187 = vpop.f32.mrf.mxu0
    %v188 = vadd.f32 %v106, %v187
    %189 = vdwg.mxu0
    %190 = vmatpush.bf16.msra.mxu0 0
    %191 = vmatpush.bf16.msra.mxu0 0
    %192 = vmatpush.bf16.msra.mxu0 0
    %193 = vmatpush.bf16.msra.mxu0 0
    %194 = vmatpush.bf16.msra.mxu0 0
    %195 = vmatpush.bf16.msra.mxu0 0
    %196 = vmatpush.bf16.msra.mxu0 0
    %197 = vmatpush.bf16.msra.mxu0 %v143
    %198 = vmatmul.bf16.gmra.mxu0 %v150
    %v199 = vpop.f32.mrf.mxu0
    %v200 = vadd.f32 %v107, %v199
    %v201 = vpop.f32.mrf.mxu0
    %v202 = vadd.f32 %v107, %v201
    %203 = vmatmul.bf16.gmra.mxu0 %v153
    %v204 = vpop.f32.mrf.mxu0
    %v205 = vadd.f32 %v107, %v204
    %v206 = vpop.f32.mrf.mxu0
    %v207 = vadd.f32 %v107, %v206
    %208 = vmatmul.bf16.gmra.mxu0 %v156
    %v209 = vpop.f32.mrf.mxu0
    %v210 = vadd.f32 %v107, %v209
    %v211 = vpop.f32.mrf.mxu0
    %v212 = vadd.f32 %v107, %v211
    %213 = vmatmul.bf16.gmra.mxu0 %v159
    %v214 = vpop.f32.mrf.mxu0
    %v215 = vadd.f32 %v107, %v214
    %v216 = vpop.f32.mrf.mxu0
    %v217 = vadd.f32 %v107, %v216
    %218 = vdwg.mxu0
    %219 = vmatpush.bf16.msra.mxu0 0
    %220 = vmatpush.bf16.msra.mxu0 0
    %221 = vmatpush.bf16.msra.mxu0 0
    %222 = vmatpush.bf16.msra.mxu0 0
    %223 = vmatpush.bf16.msra.mxu0 0
    %224 = vmatpush.bf16.msra.mxu0 0
    %225 = vmatpush.bf16.msra.mxu0 0
    %226 = vmatpush.bf16.msra.mxu0 %v144
    %227 = vmatmul.bf16.gmra.mxu0 %v150
    %v228 = vpop.f32.mrf.mxu0
    %v229 = vadd.f32 %v108, %v228
    %v230 = vpop.f32.mrf.mxu0
    %v231 = vadd.f32 %v108, %v230
    %232 = vmatmul.bf16.gmra.mxu0 %v153
    %v233 = vpop.f32.mrf.mxu0
    %v234 = vadd.f32 %v108, %v233
    %v235 = vpop.f32.mrf.mxu0
    %v236 = vadd.f32 %v108, %v235
    %237 = vmatmul.bf16.gmra.mxu0 %v156
    %v238 = vpop.f32.mrf.mxu0
    %v239 = vadd.f32 %v108, %v238
    %v240 = vpop.f32.mrf.mxu0
    %v241 = vadd.f32 %v108, %v240
    %242 = vmatmul.bf16.gmra.mxu0 %v159
    %v243 = vpop.f32.mrf.mxu0
    %v244 = vadd.f32 %v108, %v243
    %v245 = vpop.f32.mrf.mxu0
    %v246 = vadd.f32 %v108, %v245
    %247 = vdwg.mxu0
    %248 = vst [vmem:[#allocation3] sm:$0xff] %v171
    %249 = vst [vmem:[#allocation3 + $0x8] sm:$0xff] %v200
    %250 = vst [vmem:[#allocation3 + $0x10] sm:$0xff] %v229
    %251 = vst [vmem:[#allocation3 + $0x18] sm:$0xff] %v173
    %252 = vst [vmem:[#allocation3 + $0x20] sm:$0xff] %v202
    %253 = vst [vmem:[#allocation3 + $0x28] sm:$0xff] %v231
    %254 = vst [vmem:[#allocation3 + $0x30] sm:$0xff] %v176
    %255 = vst [vmem:[#allocation3 + $0x38] sm:$0xff] %v205
    %256 = vst [vmem:[#allocation3 + $0x40] sm:$0xff] %v234
    %257 = vst [vmem:[#allocation3 + $0x48] sm:$0xff] %v178
    %258 = vst [vmem:[#allocation3 + $0x50] sm:$0xff] %v207
    %259 = vst [vmem:[#allocation3 + $0x58] sm:$0xff] %v236
    %260 = vst [vmem:[#allocation3 + $0x60] sm:$0xff] %v181
    %261 = vst [vmem:[#allocation3 + $0x68] sm:$0xff] %v210
    %262 = vst [vmem:[#allocation3 + $0x70] sm:$0xff] %v239
    %263 = vst [vmem:[#allocation3 + $0x78] sm:$0xff] %v183
    %264 = vst [vmem:[#allocation3 + $0x80] sm:$0xff] %v212
    %265 = vst [vmem:[#allocation3 + $0x88] sm:$0xff] %v241
    %266 = vst [vmem:[#allocation3 + $0x90] sm:$0xff] %v186
    %267 = vst [vmem:[#allocation3 + $0x98] sm:$0xff] %v215
    %268 = vst [vmem:[#allocation3 + $0xa0] sm:$0xff] %v244
    %269 = vst [vmem:[#allocation3 + $0xa8] sm:$0xff] %v188
    %270 = vst [vmem:[#allocation3 + $0xb0] sm:$0xff] %v217
    %271 = vst [vmem:[#allocation3 + $0xb8] sm:$0xff] %v246
    %v272 = vld [vmem:[%s5] sm:$0x1]
    %v274 = vperm.slane %v272, 0
    %v276 = vld [vmem:[#allocation2] sm:$0xff]
    %v277 = vpack.c.bf16 %v276, %v276
    %v278 = vld [vmem:[#allocation10] sm:$0xff]
    %v279 = vld [vmem:[#allocation10 + $0x8] sm:$0xf]
    %v280 = vld [vmem:[#allocation10 + $0xc] sm:$0xff]
    %v281 = vld [vmem:[#allocation10 + $0x14] sm:$0xf]
    %v282 = vld [vmem:[#allocation10 + $0x18] sm:$0xff]
    %v283 = vld [vmem:[#allocation10 + $0x20] sm:$0xf]
    %v284 = vld [vmem:[#allocation10 + $0x24] sm:$0xff]
    %v285 = vld [vmem:[#allocation10 + $0x2c] sm:$0xf]
    %v286 = vld [vmem:[#allocation10 + $0x30] sm:$0xff]
    %v287 = vld [vmem:[#allocation10 + $0x38] sm:$0xf]
    %v288 = vld [vmem:[#allocation10 + $0x3c] sm:$0xff]
    %v289 = vld [vmem:[#allocation10 + $0x44] sm:$0xf]
    %v290 = vld [vmem:[#allocation10 + $0x48] sm:$0xff]
    %v291 = vld [vmem:[#allocation10 + $0x50] sm:$0xf]
    %v292 = vld [vmem:[#allocation10 + $0x54] sm:$0xff]
    %v293 = vld [vmem:[#allocation10 + $0x5c] sm:$0xf]
    %v294 = vld [vmem:[#allocation10 + $0x60] sm:$0xff]
    %v295 = vld [vmem:[#allocation10 + $0x68] sm:$0xf]
    %v296 = vld [vmem:[#allocation10 + $0x6c] sm:$0xff]
    %v297 = vld [vmem:[#allocation10 + $0x74] sm:$0xf]
    %v298 = vld [vmem:[#allocation10 + $0x78] sm:$0xff]
    %v299 = vld [vmem:[#allocation10 + $0x80] sm:$0xf]
    %v300 = vld [vmem:[#allocation10 + $0x84] sm:$0xff]
    %v301 = vld [vmem:[#allocation10 + $0x8c] sm:$0xf]
    %v302 = vld [vmem:[#allocation10 + $0x90] sm:$0xff]
    %v303 = vld [vmem:[#allocation10 + $0x98] sm:$0xf]
    %v304 = vld [vmem:[#allocation10 + $0x9c] sm:$0xff]
    %v305 = vld [vmem:[#allocation10 + $0xa4] sm:$0xf]
    %v306 = vld [vmem:[#allocation10 + $0xa8] sm:$0xff]
    %v307 = vld [vmem:[#allocation10 + $0xb0] sm:$0xf]
    %v308 = vld [vmem:[#allocation10 + $0xb4] sm:$0xff]
    %v309 = vld [vmem:[#allocation10 + $0xbc] sm:$0xf]
    %v342 = vunpack.c.l.b16 %v278
    %v343 = vunpack.c.h.b16 %v278
    %v344 = vunpack.c.l.b16 %v279
    %v345 = vunpack.c.l.b16 %v280
    %v346 = vunpack.c.h.b16 %v280
    %v347 = vunpack.c.l.b16 %v281
    %v348 = vunpack.c.l.b16 %v282
    %v349 = vunpack.c.h.b16 %v282
    %v350 = vunpack.c.l.b16 %v283
    %v351 = vunpack.c.l.b16 %v284
    %v352 = vunpack.c.h.b16 %v284
    %v353 = vunpack.c.l.b16 %v285
    %v354 = vunpack.c.l.b16 %v286
    %v355 = vunpack.c.h.b16 %v286
    %v356 = vunpack.c.l.b16 %v287
    %v357 = vunpack.c.l.b16 %v288
    %v358 = vunpack.c.h.b16 %v288
    %v359 = vunpack.c.l.b16 %v289
    %v360 = vunpack.c.l.b16 %v290
    %v361 = vunpack.c.h.b16 %v290
    %v362 = vunpack.c.l.b16 %v291
    %v363 = vunpack.c.l.b16 %v292
    %v364 = vunpack.c.h.b16 %v292
    %v365 = vunpack.c.l.b16 %v293
    %v366 = vunpack.c.l.b16 %v294
    %v367 = vunpack.c.h.b16 %v294
    %v368 = vunpack.c.l.b16 %v295
    %v369 = vunpack.c.l.b16 %v296
    %v370 = vunpack.c.h.b16 %v296
    %v371 = vunpack.c.l.b16 %v297
    %v372 = vunpack.c.l.b16 %v298
    %v373 = vunpack.c.h.b16 %v298
    %v374 = vunpack.c.l.b16 %v299
    %v375 = vunpack.c.l.b16 %v300
    %v376 = vunpack.c.h.b16 %v300
    %v377 = vunpack.c.l.b16 %v301
    %v378 = vunpack.c.l.b16 %v302
    %v379 = vunpack.c.h.b16 %v302
    %v380 = vunpack.c.l.b16 %v303
    %v381 = vunpack.c.l.b16 %v304
    %v382 = vunpack.c.h.b16 %v304
    %v383 = vunpack.c.l.b16 %v305
    %v384 = vunpack.c.l.b16 %v306
    %v385 = vunpack.c.h.b16 %v306
    %v386 = vunpack.c.l.b16 %v307
    %v387 = vunpack.c.l.b16 %v308
    %v388 = vunpack.c.h.b16 %v308
    %v389 = vunpack.c.l.b16 %v309
    %v390 = vpack.c.b16 %v345, %v342
    %v391 = vpack.c.b16 %v346, %v343
    %v392 = vpack.c.b16 %v347, %v344
    %v393 = vpack.c.b16 %v351, %v348
    %v394 = vpack.c.b16 %v352, %v349
    %v395 = vpack.c.b16 %v353, %v350
    %v396 = vpack.c.b16 %v357, %v354
    %v397 = vpack.c.b16 %v358, %v355
    %v398 = vpack.c.b16 %v359, %v356
    %v399 = vpack.c.b16 %v363, %v360
    %v400 = vpack.c.b16 %v364, %v361
    %v401 = vpack.c.b16 %v365, %v362
    %v402 = vpack.c.b16 %v369, %v366
    %v403 = vpack.c.b16 %v370, %v367
    %v404 = vpack.c.b16 %v371, %v368
    %v405 = vpack.c.b16 %v375, %v372
    %v406 = vpack.c.b16 %v376, %v373
    %v407 = vpack.c.b16 %v377, %v374
    %v408 = vpack.c.b16 %v381, %v378
    %v409 = vpack.c.b16 %v382, %v379
    %v410 = vpack.c.b16 %v383, %v380
    %v411 = vpack.c.b16 %v387, %v384
    %v412 = vpack.c.b16 %v388, %v385
    %v413 = vpack.c.b16 %v389, %v386
    %438 = vmatpush.bf16.msra.mxu0 %v411
    %439 = vmatpush.bf16.msra.mxu0 %v408
    %440 = vmatpush.bf16.msra.mxu0 %v405
    %441 = vmatpush.bf16.msra.mxu0 %v402
    %442 = vmatpush.bf16.msra.mxu0 %v399
    %443 = vmatpush.bf16.msra.mxu0 %v396
    %444 = vmatpush.bf16.msra.mxu0 %v393
    %445 = vmatpush.bf16.msra.mxu0 %v390
    %446 = vmatmul.bf16.gmra.mxu0 %v277
    %v447 = vpop.f32.mrf.mxu0
    %v448 = vadd.f32 0.0, %v447
    %v449 = vpop.f32.mrf.mxu0
    %450 = vdwg.mxu0
    %451 = vmatpush.bf16.msra.mxu0 %v412
    %452 = vmatpush.bf16.msra.mxu0 %v409
    %453 = vmatpush.bf16.msra.mxu0 %v406
    %454 = vmatpush.bf16.msra.mxu0 %v403
    %455 = vmatpush.bf16.msra.mxu0 %v400
    %456 = vmatpush.bf16.msra.mxu0 %v397
    %457 = vmatpush.bf16.msra.mxu0 %v394
    %458 = vmatpush.bf16.msra.mxu0 %v391
    %459 = vmatmul.bf16.gmra.mxu0 %v277
    %v460 = vpop.f32.mrf.mxu0
    %v461 = vadd.f32 0.0, %v460
    %v462 = vpop.f32.mrf.mxu0
    %463 = vdwg.mxu0
    %464 = vmatpush.bf16.msra.mxu0 %v413
    %465 = vmatpush.bf16.msra.mxu0 %v410
    %466 = vmatpush.bf16.msra.mxu0 %v407
    %467 = vmatpush.bf16.msra.mxu0 %v404
    %468 = vmatpush.bf16.msra.mxu0 %v401
    %469 = vmatpush.bf16.msra.mxu0 %v398
    %470 = vmatpush.bf16.msra.mxu0 %v395
    %471 = vmatpush.bf16.msra.mxu0 %v392
    %472 = vmatmul.bf16.gmra.mxu0 %v277
    %v473 = vpop.f32.mrf.mxu0
    %v474 = vadd.f32 0.0, %v473
    %v475 = vpop.f32.mrf.mxu0
    %476 = vdwg.mxu0
    %v477 = vld [vmem:[#allocation3] sm:$0xff]
    %v478 = vld [vmem:[#allocation3 + $0x8] sm:$0xff]
    %v479 = vld [vmem:[#allocation3 + $0x10] sm:$0xff]
    %v480 = vadd.f32 %v477, %v448
    %v481 = vmul.f32 %v480, 0.5
    %v482 = vtanh.pop %v481
    %v483 = vmul.f32 %v482, 0.5
    %v484 = vadd.f32 %v483, 0.5
    %v485 = vadd.f32 %v478, %v461
    %v486 = vmul.f32 %v485, 0.5
    %v487 = vtanh.pop %v486
    %v488 = vmul.f32 %v487, 0.5
    %v489 = vadd.f32 %v488, 0.5
    %v490 = vadd.f32 %v474, %v274
    %v491 = vmul.f32 %v484, %v490
    %v492 = vadd.f32 %v479, %v491
    %v493 = vtanh.pop %v492
    %v494 = vsub.f32 1.0, %v489
    %v495 = vmul.f32 %v494, %v493
    %v496 = vmul.f32 %v489, %v276
    %v497 = vadd.f32 %v495, %v496
    %498 = vst [vmem:[#allocation12] sm:$0xff] %v497
    %v499 = vpack.c.bf16 %v497, %v497
    %v500 = vld [vmem:[#allocation10] sm:$0xff]
    %v501 = vld [vmem:[#allocation10 + $0x8] sm:$0xf]
    %v502 = vld [vmem:[#allocation10 + $0xc] sm:$0xff]
    %v503 = vld [vmem:[#allocation10 + $0x14] sm:$0xf]
    %v504 = vld [vmem:[#allocation10 + $0x18] sm:$0xff]
    %v505 = vld [vmem:[#allocation10 + $0x20] sm:$0xf]
    %v506 = vld [vmem:[#allocation10 + $0x24] sm:$0xff]
    %v507 = vld [vmem:[#allocation10 + $0x2c] sm:$0xf]
    %v508 = vld [vmem:[#allocation10 + $0x30] sm:$0xff]
    %v509 = vld [vmem:[#allocation10 + $0x38] sm:$0xf]
    %v510 = vld [vmem:[#allocation10 + $0x3c] sm:$0xff]
    %v511 = vld [vmem:[#allocation10 + $0x44] sm:$0xf]
    %v512 = vld [vmem:[#allocation10 + $0x48] sm:$0xff]
    %v513 = vld [vmem:[#allocation10 + $0x50] sm:$0xf]
    %v514 = vld [vmem:[#allocation10 + $0x54] sm:$0xff]
    %v515 = vld [vmem:[#allocation10 + $0x5c] sm:$0xf]
    %v516 = vld [vmem:[#allocation10 + $0x60] sm:$0xff]
    %v517 = vld [vmem:[#allocation10 + $0x68] sm:$0xf]
    %v518 = vld [vmem:[#allocation10 + $0x6c] sm:$0xff]
    %v519 = vld [vmem:[#allocation10 + $0x74] sm:$0xf]
    %v520 = vld [vmem:[#allocation10 + $0x78] sm:$0xff]
    %v521 = vld [vmem:[#allocation10 + $0x80] sm:$0xf]
    %v522 = vld [vmem:[#allocation10 + $0x84] sm:$0xff]
    %v523 = vld [vmem:[#allocation10 + $0x8c] sm:$0xf]
    %v524 = vld [vmem:[#allocation10 + $0x90] sm:$0xff]
    %v525 = vld [vmem:[#allocation10 + $0x98] sm:$0xf]
    %v526 = vld [vmem:[#allocation10 + $0x9c] sm:$0xff]
    %v527 = vld [vmem:[#allocation10 + $0xa4] sm:$0xf]
    %v528 = vld [vmem:[#allocation10 + $0xa8] sm:$0xff]
    %v529 = vld [vmem:[#allocation10 + $0xb0] sm:$0xf]
    %v530 = vld [vmem:[#allocation10 + $0xb4] sm:$0xff]
    %v531 = vld [vmem:[#allocation10 + $0xbc] sm:$0xf]
    %v564 = vunpack.c.l.b16 %v500
    %v565 = vunpack.c.h.b16 %v500
    %v566 = vunpack.c.l.b16 %v501
    %v567 = vunpack.c.l.b16 %v502
    %v568 = vunpack.c.h.b16 %v502
    %v569 = vunpack.c.l.b16 %v503
    %v570 = vunpack.c.l.b16 %v504
    %v571 = vunpack.c.h.b16 %v504
    %v572 = vunpack.c.l.b16 %v505
    %v573 = vunpack.c.l.b16 %v506
    %v574 = vunpack.c.h.b16 %v506
    %v575 = vunpack.c.l.b16 %v507
    %v576 = vunpack.c.l.b16 %v508
    %v577 = vunpack.c.h.b16 %v508
    %v578 = vunpack.c.l.b16 %v509
    %v579 = vunpack.c.l.b16 %v510
    %v580 = vunpack.c.h.b16 %v510
    %v581 = vunpack.c.l.b16 %v511
    %v582 = vunpack.c.l.b16 %v512
    %v583 = vunpack.c.h.b16 %v512
    %v584 = vunpack.c.l.b16 %v513
    %v585 = vunpack.c.l.b16 %v514
    %v586 = vunpack.c.h.b16 %v514
    %v587 = vunpack.c.l.b16 %v515
    %v588 = vunpack.c.l.b16 %v516
    %v589 = vunpack.c.h.b16 %v516
    %v590 = vunpack.c.l.b16 %v517
    %v591 = vunpack.c.l.b16 %v518
    %v592 = vunpack.c.h.b16 %v518
    %v593 = vunpack.c.l.b16 %v519
    %v594 = vunpack.c.l.b16 %v520
    %v595 = vunpack.c.h.b16 %v520
    %v596 = vunpack.c.l.b16 %v521
    %v597 = vunpack.c.l.b16 %v522
    %v598 = vunpack.c.h.b16 %v522
    %v599 = vunpack.c.l.b16 %v523
    %v600 = vunpack.c.l.b16 %v524
    %v601 = vunpack.c.h.b16 %v524
    %v602 = vunpack.c.l.b16 %v525
    %v603 = vunpack.c.l.b16 %v526
    %v604 = vunpack.c.h.b16 %v526
    %v605 = vunpack.c.l.b16 %v527
    %v606 = vunpack.c.l.b16 %v528
    %v607 = vunpack.c.h.b16 %v528
    %v608 = vunpack.c.l.b16 %v529
    %v609 = vunpack.c.l.b16 %v530
    %v610 = vunpack.c.h.b16 %v530
    %v611 = vunpack.c.l.b16 %v531
    %v612 = vpack.c.b16 %v567, %v564
    %v613 = vpack.c.b16 %v568, %v565
    %v614 = vpack.c.b16 %v569, %v566
    %v615 = vpack.c.b16 %v573, %v570
    %v616 = vpack.c.b16 %v574, %v571
    %v617 = vpack.c.b16 %v575, %v572
    %v618 = vpack.c.b16 %v579, %v576
    %v619 = vpack.c.b16 %v580, %v577
    %v620 = vpack.c.b16 %v581, %v578
    %v621 = vpack.c.b16 %v585, %v582
    %v622 = vpack.c.b16 %v586, %v583
    %v623 = vpack.c.b16 %v587, %v584
    %v624 = vpack.c.b16 %v591, %v588
    %v625 = vpack.c.b16 %v592, %v589
    %v626 = vpack.c.b16 %v593, %v590
    %v627 = vpack.c.b16 %v597, %v594
    %v628 = vpack.c.b16 %v598, %v595
    %v629 = vpack.c.b16 %v599, %v596
    %v630 = vpack.c.b16 %v603, %v600
    %v631 = vpack.c.b16 %v604, %v601
    %v632 = vpack.c.b16 %v605, %v602
    %v633 = vpack.c.b16 %v609, %v606
    %v634 = vpack.c.b16 %v610, %v607
    %v635 = vpack.c.b16 %v611, %v608
    %660 = vmatpush.bf16.msra.mxu0 %v633
    %661 = vmatpush.bf16.msra.mxu0 %v630
    %662 = vmatpush.bf16.msra.mxu0 %v627
    %663 = vmatpush.bf16.msra.mxu0 %v624
    %664 = vmatpush.bf16.msra.mxu0 %v621
    %665 = vmatpush.bf16.msra.mxu0 %v618
    %666 = vmatpush.bf16.msra.mxu0 %v615
    %667 = vmatpush.bf16.msra.mxu0 %v612
    %668 = vmatmul.bf16.gmra.mxu0 %v499
    %v669 = vpop.f32.mrf.mxu0
    %v670 = vadd.f32 0.0, %v669
    %v671 = vpop.f32.mrf.mxu0
    %672 = vdwg.mxu0
    %673 = vmatpush.bf16.msra.mxu0 %v634
    %674 = vmatpush.bf16.msra.mxu0 %v631
    %675 = vmatpush.bf16.msra.mxu0 %v628
    %676 = vmatpush.bf16.msra.mxu0 %v625
    %677 = vmatpush.bf16.msra.mxu0 %v622
    %678 = vmatpush.bf16.msra.mxu0 %v619
    %679 = vmatpush.bf16.msra.mxu0 %v616
    %680 = vmatpush.bf16.msra.mxu0 %v613
    %681 = vmatmul.bf16.gmra.mxu0 %v499
    %v682 = vpop.f32.mrf.mxu0
    %v683 = vadd.f32 0.0, %v682
    %v684 = vpop.f32.mrf.mxu0
    %685 = vdwg.mxu0
    %686 = vmatpush.bf16.msra.mxu0 %v635
    %687 = vmatpush.bf16.msra.mxu0 %v632
    %688 = vmatpush.bf16.msra.mxu0 %v629
    %689 = vmatpush.bf16.msra.mxu0 %v626
    %690 = vmatpush.bf16.msra.mxu0 %v623
    %691 = vmatpush.bf16.msra.mxu0 %v620
    %692 = vmatpush.bf16.msra.mxu0 %v617
    %693 = vmatpush.bf16.msra.mxu0 %v614
    %694 = vmatmul.bf16.gmra.mxu0 %v499
    %v695 = vpop.f32.mrf.mxu0
    %v696 = vadd.f32 0.0, %v695
    %v697 = vpop.f32.mrf.mxu0
    %698 = vdwg.mxu0
    %s699 = scalar_lea.vmem [#allocation3], 24
    %v700 = vld [vmem:[%s699] sm:$0xff]
    %v701 = vld [vmem:[%s699 + $0x8] sm:$0xff]
    %v702 = vld [vmem:[%s699 + $0x10] sm:$0xff]
    %v703 = vadd.f32 %v700, %v670
    %v704 = vmul.f32 %v703, 0.5
    %v705 = vtanh.pop %v704
    %v706 = vmul.f32 %v705, 0.5
    %v707 = vadd.f32 %v706, 0.5
    %v708 = vadd.f32 %v701, %v683
    %v709 = vmul.f32 %v708, 0.5
    %v710 = vtanh.pop %v709
    %v711 = vmul.f32 %v710, 0.5
    %v712 = vadd.f32 %v711, 0.5
    %v713 = vadd.f32 %v696, %v274
    %v714 = vmul.f32 %v707, %v713
    %v715 = vadd.f32 %v702, %v714
    %v716 = vtanh.pop %v715
    %v717 = vsub.f32 1.0, %v712
    %v718 = vmul.f32 %v717, %v716
    %v719 = vmul.f32 %v712, %v497
    %v720 = vadd.f32 %v718, %v719
    %s721 = scalar_lea.vmem [#allocation12], 8
    %722 = vst [vmem:[%s721] sm:$0xff] %v720
    %v723 = vpack.c.bf16 %v720, %v720
    %v724 = vld [vmem:[#allocation10] sm:$0xff]
    %v725 = vld [vmem:[#allocation10 + $0x8] sm:$0xf]
    %v726 = vld [vmem:[#allocation10 + $0xc] sm:$0xff]
    %v727 = vld [vmem:[#allocation10 + $0x14] sm:$0xf]
    %v728 = vld [vmem:[#allocation10 + $0x18] sm:$0xff]
    %v729 = vld [vmem:[#allocation10 + $0x20] sm:$0xf]
    %v730 = vld [vmem:[#allocation10 + $0x24] sm:$0xff]
    %v731 = vld [vmem:[#allocation10 + $0x2c] sm:$0xf]
    %v732 = vld [vmem:[#allocation10 + $0x30] sm:$0xff]
    %v733 = vld [vmem:[#allocation10 + $0x38] sm:$0xf]
    %v734 = vld [vmem:[#allocation10 + $0x3c] sm:$0xff]
    %v735 = vld [vmem:[#allocation10 + $0x44] sm:$0xf]
    %v736 = vld [vmem:[#allocation10 + $0x48] sm:$0xff]
    %v737 = vld [vmem:[#allocation10 + $0x50] sm:$0xf]
    %v738 = vld [vmem:[#allocation10 + $0x54] sm:$0xff]
    %v739 = vld [vmem:[#allocation10 + $0x5c] sm:$0xf]
    %v740 = vld [vmem:[#allocation10 + $0x60] sm:$0xff]
    %v741 = vld [vmem:[#allocation10 + $0x68] sm:$0xf]
    %v742 = vld [vmem:[#allocation10 + $0x6c] sm:$0xff]
    %v743 = vld [vmem:[#allocation10 + $0x74] sm:$0xf]
    %v744 = vld [vmem:[#allocation10 + $0x78] sm:$0xff]
    %v745 = vld [vmem:[#allocation10 + $0x80] sm:$0xf]
    %v746 = vld [vmem:[#allocation10 + $0x84] sm:$0xff]
    %v747 = vld [vmem:[#allocation10 + $0x8c] sm:$0xf]
    %v748 = vld [vmem:[#allocation10 + $0x90] sm:$0xff]
    %v749 = vld [vmem:[#allocation10 + $0x98] sm:$0xf]
    %v750 = vld [vmem:[#allocation10 + $0x9c] sm:$0xff]
    %v751 = vld [vmem:[#allocation10 + $0xa4] sm:$0xf]
    %v752 = vld [vmem:[#allocation10 + $0xa8] sm:$0xff]
    %v753 = vld [vmem:[#allocation10 + $0xb0] sm:$0xf]
    %v754 = vld [vmem:[#allocation10 + $0xb4] sm:$0xff]
    %v755 = vld [vmem:[#allocation10 + $0xbc] sm:$0xf]
    %v788 = vunpack.c.l.b16 %v724
    %v789 = vunpack.c.h.b16 %v724
    %v790 = vunpack.c.l.b16 %v725
    %v791 = vunpack.c.l.b16 %v726
    %v792 = vunpack.c.h.b16 %v726
    %v793 = vunpack.c.l.b16 %v727
    %v794 = vunpack.c.l.b16 %v728
    %v795 = vunpack.c.h.b16 %v728
    %v796 = vunpack.c.l.b16 %v729
    %v797 = vunpack.c.l.b16 %v730
    %v798 = vunpack.c.h.b16 %v730
    %v799 = vunpack.c.l.b16 %v731
    %v800 = vunpack.c.l.b16 %v732
    %v801 = vunpack.c.h.b16 %v732
    %v802 = vunpack.c.l.b16 %v733
    %v803 = vunpack.c.l.b16 %v734
    %v804 = vunpack.c.h.b16 %v734
    %v805 = vunpack.c.l.b16 %v735
    %v806 = vunpack.c.l.b16 %v736
    %v807 = vunpack.c.h.b16 %v736
    %v808 = vunpack.c.l.b16 %v737
    %v809 = vunpack.c.l.b16 %v738
    %v810 = vunpack.c.h.b16 %v738
    %v811 = vunpack.c.l.b16 %v739
    %v812 = vunpack.c.l.b16 %v740
    %v813 = vunpack.c.h.b16 %v740
    %v814 = vunpack.c.l.b16 %v741
    %v815 = vunpack.c.l.b16 %v742
    %v816 = vunpack.c.h.b16 %v742
    %v817 = vunpack.c.l.b16 %v743
    %v818 = vunpack.c.l.b16 %v744
    %v819 = vunpack.c.h.b16 %v744
    %v820 = vunpack.c.l.b16 %v745
    %v821 = vunpack.c.l.b16 %v746
    %v822 = vunpack.c.h.b16 %v746
    %v823 = vunpack.c.l.b16 %v747
    %v824 = vunpack.c.l.b16 %v748
    %v825 = vunpack.c.h.b16 %v748
    %v826 = vunpack.c.l.b16 %v749
    %v827 = vunpack.c.l.b16 %v750
    %v828 = vunpack.c.h.b16 %v750
    %v829 = vunpack.c.l.b16 %v751
    %v830 = vunpack.c.l.b16 %v752
    %v831 = vunpack.c.h.b16 %v752
    %v832 = vunpack.c.l.b16 %v753
    %v833 = vunpack.c.l.b16 %v754
    %v834 = vunpack.c.h.b16 %v754
    %v835 = vunpack.c.l.b16 %v755
    %v836 = vpack.c.b16 %v791, %v788
    %v837 = vpack.c.b16 %v792, %v789
    %v838 = vpack.c.b16 %v793, %v790
    %v839 = vpack.c.b16 %v797, %v794
    %v840 = vpack.c.b16 %v798, %v795
    %v841 = vpack.c.b16 %v799, %v796
    %v842 = vpack.c.b16 %v803, %v800
    %v843 = vpack.c.b16 %v804, %v801
    %v844 = vpack.c.b16 %v805, %v802
    %v845 = vpack.c.b16 %v809, %v806
    %v846 = vpack.c.b16 %v810, %v807
    %v847 = vpack.c.b16 %v811, %v808
    %v848 = vpack.c.b16 %v815, %v812
    %v849 = vpack.c.b16 %v816, %v813
    %v850 = vpack.c.b16 %v817, %v814
    %v851 = vpack.c.b16 %v821, %v818
    %v852 = vpack.c.b16 %v822, %v819
    %v853 = vpack.c.b16 %v823, %v820
    %v854 = vpack.c.b16 %v827, %v824
    %v855 = vpack.c.b16 %v828, %v825
    %v856 = vpack.c.b16 %v829, %v826
    %v857 = vpack.c.b16 %v833, %v830
    %v858 = vpack.c.b16 %v834, %v831
    %v859 = vpack.c.b16 %v835, %v832
    %884 = vmatpush.bf16.msra.mxu0 %v857
    %885 = vmatpush.bf16.msra.mxu0 %v854
    %886 = vmatpush.bf16.msra.mxu0 %v851
    %887 = vmatpush.bf16.msra.mxu0 %v848
    %888 = vmatpush.bf16.msra.mxu0 %v845
    %889 = vmatpush.bf16.msra.mxu0 %v842
    %890 = vmatpush.bf16.msra.mxu0 %v839
    %891 = vmatpush.bf16.msra.mxu0 %v836
    %892 = vmatmul.bf16.gmra.mxu0 %v723
    %v893 = vpop.f32.mrf.mxu0
    %v894 = vadd.f32 0.0, %v893
    %v895 = vpop.f32.mrf.mxu0
    %896 = vdwg.mxu0
    %897 = vmatpush.bf16.msra.mxu0 %v858
    %898 = vmatpush.bf16.msra.mxu0 %v855
    %899 = vmatpush.bf16.msra.mxu0 %v852
    %900 = vmatpush.bf16.msra.mxu0 %v849
    %901 = vmatpush.bf16.msra.mxu0 %v846
    %902 = vmatpush.bf16.msra.mxu0 %v843
    %903 = vmatpush.bf16.msra.mxu0 %v840
    %904 = vmatpush.bf16.msra.mxu0 %v837
    %905 = vmatmul.bf16.gmra.mxu0 %v723
    %v906 = vpop.f32.mrf.mxu0
    %v907 = vadd.f32 0.0, %v906
    %v908 = vpop.f32.mrf.mxu0
    %909 = vdwg.mxu0
    %910 = vmatpush.bf16.msra.mxu0 %v859
    %911 = vmatpush.bf16.msra.mxu0 %v856
    %912 = vmatpush.bf16.msra.mxu0 %v853
    %913 = vmatpush.bf16.msra.mxu0 %v850
    %914 = vmatpush.bf16.msra.mxu0 %v847
    %915 = vmatpush.bf16.msra.mxu0 %v844
    %916 = vmatpush.bf16.msra.mxu0 %v841
    %917 = vmatpush.bf16.msra.mxu0 %v838
    %918 = vmatmul.bf16.gmra.mxu0 %v723
    %v919 = vpop.f32.mrf.mxu0
    %v920 = vadd.f32 0.0, %v919
    %v921 = vpop.f32.mrf.mxu0
    %922 = vdwg.mxu0
    %s923 = scalar_lea.vmem [#allocation3], 48
    %v924 = vld [vmem:[%s923] sm:$0xff]
    %v925 = vld [vmem:[%s923 + $0x8] sm:$0xff]
    %v926 = vld [vmem:[%s923 + $0x10] sm:$0xff]
    %v927 = vadd.f32 %v924, %v894
    %v928 = vmul.f32 %v927, 0.5
    %v929 = vtanh.pop %v928
    %v930 = vmul.f32 %v929, 0.5
    %v931 = vadd.f32 %v930, 0.5
    %v932 = vadd.f32 %v925, %v907
    %v933 = vmul.f32 %v932, 0.5
    %v934 = vtanh.pop %v933
    %v935 = vmul.f32 %v934, 0.5
    %v936 = vadd.f32 %v935, 0.5
    %v937 = vadd.f32 %v920, %v274
    %v938 = vmul.f32 %v931, %v937
    %v939 = vadd.f32 %v926, %v938
    %v940 = vtanh.pop %v939
    %v941 = vsub.f32 1.0, %v936
    %v942 = vmul.f32 %v941, %v940
    %v943 = vmul.f32 %v936, %v720
    %v944 = vadd.f32 %v942, %v943
    %s945 = scalar_lea.vmem [#allocation12], 16
    %946 = vst [vmem:[%s945] sm:$0xff] %v944
    %v947 = vpack.c.bf16 %v944, %v944
    %v948 = vld [vmem:[#allocation10] sm:$0xff]
    %v949 = vld [vmem:[#allocation10 + $0x8] sm:$0xf]
    %v950 = vld [vmem:[#allocation10 + $0xc] sm:$0xff]
    %v951 = vld [vmem:[#allocation10 + $0x14] sm:$0xf]
    %v952 = vld [vmem:[#allocation10 + $0x18] sm:$0xff]
    %v953 = vld [vmem:[#allocation10 + $0x20] sm:$0xf]
    %v954 = vld [vmem:[#allocation10 + $0x24] sm:$0xff]
    %v955 = vld [vmem:[#allocation10 + $0x2c] sm:$0xf]
    %v956 = vld [vmem:[#allocation10 + $0x30] sm:$0xff]
    %v957 = vld [vmem:[#allocation10 + $0x38] sm:$0xf]
    %v958 = vld [vmem:[#allocation10 + $0x3c] sm:$0xff]
    %v959 = vld [vmem:[#allocation10 + $0x44] sm:$0xf]
    %v960 = vld [vmem:[#allocation10 + $0x48] sm:$0xff]
    %v961 = vld [vmem:[#allocation10 + $0x50] sm:$0xf]
    %v962 = vld [vmem:[#allocation10 + $0x54] sm:$0xff]
    %v963 = vld [vmem:[#allocation10 + $0x5c] sm:$0xf]
    %v964 = vld [vmem:[#allocation10 + $0x60] sm:$0xff]
    %v965 = vld [vmem:[#allocation10 + $0x68] sm:$0xf]
    %v966 = vld [vmem:[#allocation10 + $0x6c] sm:$0xff]
    %v967 = vld [vmem:[#allocation10 + $0x74] sm:$0xf]
    %v968 = vld [vmem:[#allocation10 + $0x78] sm:$0xff]
    %v969 = vld [vmem:[#allocation10 + $0x80] sm:$0xf]
    %v970 = vld [vmem:[#allocation10 + $0x84] sm:$0xff]
    %v971 = vld [vmem:[#allocation10 + $0x8c] sm:$0xf]
    %v972 = vld [vmem:[#allocation10 + $0x90] sm:$0xff]
    %v973 = vld [vmem:[#allocation10 + $0x98] sm:$0xf]
    %v974 = vld [vmem:[#allocation10 + $0x9c] sm:$0xff]
    %v975 = vld [vmem:[#allocation10 + $0xa4] sm:$0xf]
    %v976 = vld [vmem:[#allocation10 + $0xa8] sm:$0xff]
    %v977 = vld [vmem:[#allocation10 + $0xb0] sm:$0xf]
    %v978 = vld [vmem:[#allocation10 + $0xb4] sm:$0xff]
    %v979 = vld [vmem:[#allocation10 + $0xbc] sm:$0xf]
    %v1012 = vunpack.c.l.b16 %v948
    %v1013 = vunpack.c.h.b16 %v948
    %v1014 = vunpack.c.l.b16 %v949
    %v1015 = vunpack.c.l.b16 %v950
    %v1016 = vunpack.c.h.b16 %v950
    %v1017 = vunpack.c.l.b16 %v951
    %v1018 = vunpack.c.l.b16 %v952
    %v1019 = vunpack.c.h.b16 %v952
    %v1020 = vunpack.c.l.b16 %v953
    %v1021 = vunpack.c.l.b16 %v954
    %v1022 = vunpack.c.h.b16 %v954
    %v1023 = vunpack.c.l.b16 %v955
    %v1024 = vunpack.c.l.b16 %v956
    %v1025 = vunpack.c.h.b16 %v956
    %v1026 = vunpack.c.l.b16 %v957
    %v1027 = vunpack.c.l.b16 %v958
    %v1028 = vunpack.c.h.b16 %v958
    %v1029 = vunpack.c.l.b16 %v959
    %v1030 = vunpack.c.l.b16 %v960
    %v1031 = vunpack.c.h.b16 %v960
    %v1032 = vunpack.c.l.b16 %v961
    %v1033 = vunpack.c.l.b16 %v962
    %v1034 = vunpack.c.h.b16 %v962
    %v1035 = vunpack.c.l.b16 %v963
    %v1036 = vunpack.c.l.b16 %v964
    %v1037 = vunpack.c.h.b16 %v964
    %v1038 = vunpack.c.l.b16 %v965
    %v1039 = vunpack.c.l.b16 %v966
    %v1040 = vunpack.c.h.b16 %v966
    %v1041 = vunpack.c.l.b16 %v967
    %v1042 = vunpack.c.l.b16 %v968
    %v1043 = vunpack.c.h.b16 %v968
    %v1044 = vunpack.c.l.b16 %v969
    %v1045 = vunpack.c.l.b16 %v970
    %v1046 = vunpack.c.h.b16 %v970
    %v1047 = vunpack.c.l.b16 %v971
    %v1048 = vunpack.c.l.b16 %v972
    %v1049 = vunpack.c.h.b16 %v972
    %v1050 = vunpack.c.l.b16 %v973
    %v1051 = vunpack.c.l.b16 %v974
    %v1052 = vunpack.c.h.b16 %v974
    %v1053 = vunpack.c.l.b16 %v975
    %v1054 = vunpack.c.l.b16 %v976
    %v1055 = vunpack.c.h.b16 %v976
    %v1056 = vunpack.c.l.b16 %v977
    %v1057 = vunpack.c.l.b16 %v978
    %v1058 = vunpack.c.h.b16 %v978
    %v1059 = vunpack.c.l.b16 %v979
    %v1060 = vpack.c.b16 %v1015, %v1012
    %v1061 = vpack.c.b16 %v1016, %v1013
    %v1062 = vpack.c.b16 %v1017, %v1014
    %v1063 = vpack.c.b16 %v1021, %v1018
    %v1064 = vpack.c.b16 %v1022, %v1019
    %v1065 = vpack.c.b16 %v1023, %v1020
    %v1066 = vpack.c.b16 %v1027, %v1024
    %v1067 = vpack.c.b16 %v1028, %v1025
    %v1068 = vpack.c.b16 %v1029, %v1026
    %v1069 = vpack.c.b16 %v1033, %v1030
    %v1070 = vpack.c.b16 %v1034, %v1031
    %v1071 = vpack.c.b16 %v1035, %v1032
    %v1072 = vpack.c.b16 %v1039, %v1036
    %v1073 = vpack.c.b16 %v1040, %v1037
    %v1074 = vpack.c.b16 %v1041, %v1038
    %v1075 = vpack.c.b16 %v1045, %v1042
    %v1076 = vpack.c.b16 %v1046, %v1043
    %v1077 = vpack.c.b16 %v1047, %v1044
    %v1078 = vpack.c.b16 %v1051, %v1048
    %v1079 = vpack.c.b16 %v1052, %v1049
    %v1080 = vpack.c.b16 %v1053, %v1050
    %v1081 = vpack.c.b16 %v1057, %v1054
    %v1082 = vpack.c.b16 %v1058, %v1055
    %v1083 = vpack.c.b16 %v1059, %v1056
    %1108 = vmatpush.bf16.msra.mxu0 %v1081
    %1109 = vmatpush.bf16.msra.mxu0 %v1078
    %1110 = vmatpush.bf16.msra.mxu0 %v1075
    %1111 = vmatpush.bf16.msra.mxu0 %v1072
    %1112 = vmatpush.bf16.msra.mxu0 %v1069
    %1113 = vmatpush.bf16.msra.mxu0 %v1066
    %1114 = vmatpush.bf16.msra.mxu0 %v1063
    %1115 = vmatpush.bf16.msra.mxu0 %v1060
    %1116 = vmatmul.bf16.gmra.mxu0 %v947
    %v1117 = vpop.f32.mrf.mxu0
    %v1118 = vadd.f32 0.0, %v1117
    %v1119 = vpop.f32.mrf.mxu0
    %1120 = vdwg.mxu0
    %1121 = vmatpush.bf16.msra.mxu0 %v1082
    %1122 = vmatpush.bf16.msra.mxu0 %v1079
    %1123 = vmatpush.bf16.msra.mxu0 %v1076
    %1124 = vmatpush.bf16.msra.mxu0 %v1073
    %1125 = vmatpush.bf16.msra.mxu0 %v1070
    %1126 = vmatpush.bf16.msra.mxu0 %v1067
    %1127 = vmatpush.bf16.msra.mxu0 %v1064
    %1128 = vmatpush.bf16.msra.mxu0 %v1061
    %1129 = vmatmul.bf16.gmra.mxu0 %v947
    %v1130 = vpop.f32.mrf.mxu0
    %v1131 = vadd.f32 0.0, %v1130
    %v1132 = vpop.f32.mrf.mxu0
    %1133 = vdwg.mxu0
    %1134 = vmatpush.bf16.msra.mxu0 %v1083
    %1135 = vmatpush.bf16.msra.mxu0 %v1080
    %1136 = vmatpush.bf16.msra.mxu0 %v1077
    %1137 = vmatpush.bf16.msra.mxu0 %v1074
    %1138 = vmatpush.bf16.msra.mxu0 %v1071
    %1139 = vmatpush.bf16.msra.mxu0 %v1068
    %1140 = vmatpush.bf16.msra.mxu0 %v1065
    %1141 = vmatpush.bf16.msra.mxu0 %v1062
    %1142 = vmatmul.bf16.gmra.mxu0 %v947
    %v1143 = vpop.f32.mrf.mxu0
    %v1144 = vadd.f32 0.0, %v1143
    %v1145 = vpop.f32.mrf.mxu0
    %1146 = vdwg.mxu0
    %s1147 = scalar_lea.vmem [#allocation3], 72
    %v1148 = vld [vmem:[%s1147] sm:$0xff]
    %v1149 = vld [vmem:[%s1147 + $0x8] sm:$0xff]
    %v1150 = vld [vmem:[%s1147 + $0x10] sm:$0xff]
    %v1151 = vadd.f32 %v1148, %v1118
    %v1152 = vmul.f32 %v1151, 0.5
    %v1153 = vtanh.pop %v1152
    %v1154 = vmul.f32 %v1153, 0.5
    %v1155 = vadd.f32 %v1154, 0.5
    %v1156 = vadd.f32 %v1149, %v1131
    %v1157 = vmul.f32 %v1156, 0.5
    %v1158 = vtanh.pop %v1157
    %v1159 = vmul.f32 %v1158, 0.5
    %v1160 = vadd.f32 %v1159, 0.5
    %v1161 = vadd.f32 %v1144, %v274
    %v1162 = vmul.f32 %v1155, %v1161
    %v1163 = vadd.f32 %v1150, %v1162
    %v1164 = vtanh.pop %v1163
    %v1165 = vsub.f32 1.0, %v1160
    %v1166 = vmul.f32 %v1165, %v1164
    %v1167 = vmul.f32 %v1160, %v944
    %v1168 = vadd.f32 %v1166, %v1167
    %s1169 = scalar_lea.vmem [#allocation12], 24
    %1170 = vst [vmem:[%s1169] sm:$0xff] %v1168
    %v1171 = vpack.c.bf16 %v1168, %v1168
    %v1172 = vld [vmem:[#allocation10] sm:$0xff]
    %v1173 = vld [vmem:[#allocation10 + $0x8] sm:$0xf]
    %v1174 = vld [vmem:[#allocation10 + $0xc] sm:$0xff]
    %v1175 = vld [vmem:[#allocation10 + $0x14] sm:$0xf]
    %v1176 = vld [vmem:[#allocation10 + $0x18] sm:$0xff]
    %v1177 = vld [vmem:[#allocation10 + $0x20] sm:$0xf]
    %v1178 = vld [vmem:[#allocation10 + $0x24] sm:$0xff]
    %v1179 = vld [vmem:[#allocation10 + $0x2c] sm:$0xf]
    %v1180 = vld [vmem:[#allocation10 + $0x30] sm:$0xff]
    %v1181 = vld [vmem:[#allocation10 + $0x38] sm:$0xf]
    %v1182 = vld [vmem:[#allocation10 + $0x3c] sm:$0xff]
    %v1183 = vld [vmem:[#allocation10 + $0x44] sm:$0xf]
    %v1184 = vld [vmem:[#allocation10 + $0x48] sm:$0xff]
    %v1185 = vld [vmem:[#allocation10 + $0x50] sm:$0xf]
    %v1186 = vld [vmem:[#allocation10 + $0x54] sm:$0xff]
    %v1187 = vld [vmem:[#allocation10 + $0x5c] sm:$0xf]
    %v1188 = vld [vmem:[#allocation10 + $0x60] sm:$0xff]
    %v1189 = vld [vmem:[#allocation10 + $0x68] sm:$0xf]
    %v1190 = vld [vmem:[#allocation10 + $0x6c] sm:$0xff]
    %v1191 = vld [vmem:[#allocation10 + $0x74] sm:$0xf]
    %v1192 = vld [vmem:[#allocation10 + $0x78] sm:$0xff]
    %v1193 = vld [vmem:[#allocation10 + $0x80] sm:$0xf]
    %v1194 = vld [vmem:[#allocation10 + $0x84] sm:$0xff]
    %v1195 = vld [vmem:[#allocation10 + $0x8c] sm:$0xf]
    %v1196 = vld [vmem:[#allocation10 + $0x90] sm:$0xff]
    %v1197 = vld [vmem:[#allocation10 + $0x98] sm:$0xf]
    %v1198 = vld [vmem:[#allocation10 + $0x9c] sm:$0xff]
    %v1199 = vld [vmem:[#allocation10 + $0xa4] sm:$0xf]
    %v1200 = vld [vmem:[#allocation10 + $0xa8] sm:$0xff]
    %v1201 = vld [vmem:[#allocation10 + $0xb0] sm:$0xf]
    %v1202 = vld [vmem:[#allocation10 + $0xb4] sm:$0xff]
    %v1203 = vld [vmem:[#allocation10 + $0xbc] sm:$0xf]
    %v1236 = vunpack.c.l.b16 %v1172
    %v1237 = vunpack.c.h.b16 %v1172
    %v1238 = vunpack.c.l.b16 %v1173
    %v1239 = vunpack.c.l.b16 %v1174
    %v1240 = vunpack.c.h.b16 %v1174
    %v1241 = vunpack.c.l.b16 %v1175
    %v1242 = vunpack.c.l.b16 %v1176
    %v1243 = vunpack.c.h.b16 %v1176
    %v1244 = vunpack.c.l.b16 %v1177
    %v1245 = vunpack.c.l.b16 %v1178
    %v1246 = vunpack.c.h.b16 %v1178
    %v1247 = vunpack.c.l.b16 %v1179
    %v1248 = vunpack.c.l.b16 %v1180
    %v1249 = vunpack.c.h.b16 %v1180
    %v1250 = vunpack.c.l.b16 %v1181
    %v1251 = vunpack.c.l.b16 %v1182
    %v1252 = vunpack.c.h.b16 %v1182
    %v1253 = vunpack.c.l.b16 %v1183
    %v1254 = vunpack.c.l.b16 %v1184
    %v1255 = vunpack.c.h.b16 %v1184
    %v1256 = vunpack.c.l.b16 %v1185
    %v1257 = vunpack.c.l.b16 %v1186
    %v1258 = vunpack.c.h.b16 %v1186
    %v1259 = vunpack.c.l.b16 %v1187
    %v1260 = vunpack.c.l.b16 %v1188
    %v1261 = vunpack.c.h.b16 %v1188
    %v1262 = vunpack.c.l.b16 %v1189
    %v1263 = vunpack.c.l.b16 %v1190
    %v1264 = vunpack.c.h.b16 %v1190
    %v1265 = vunpack.c.l.b16 %v1191
    %v1266 = vunpack.c.l.b16 %v1192
    %v1267 = vunpack.c.h.b16 %v1192
    %v1268 = vunpack.c.l.b16 %v1193
    %v1269 = vunpack.c.l.b16 %v1194
    %v1270 = vunpack.c.h.b16 %v1194
    %v1271 = vunpack.c.l.b16 %v1195
    %v1272 = vunpack.c.l.b16 %v1196
    %v1273 = vunpack.c.h.b16 %v1196
    %v1274 = vunpack.c.l.b16 %v1197
    %v1275 = vunpack.c.l.b16 %v1198
    %v1276 = vunpack.c.h.b16 %v1198
    %v1277 = vunpack.c.l.b16 %v1199
    %v1278 = vunpack.c.l.b16 %v1200
    %v1279 = vunpack.c.h.b16 %v1200
    %v1280 = vunpack.c.l.b16 %v1201
    %v1281 = vunpack.c.l.b16 %v1202
    %v1282 = vunpack.c.h.b16 %v1202
    %v1283 = vunpack.c.l.b16 %v1203
    %v1284 = vpack.c.b16 %v1239, %v1236
    %v1285 = vpack.c.b16 %v1240, %v1237
    %v1286 = vpack.c.b16 %v1241, %v1238
    %v1287 = vpack.c.b16 %v1245, %v1242
    %v1288 = vpack.c.b16 %v1246, %v1243
    %v1289 = vpack.c.b16 %v1247, %v1244
    %v1290 = vpack.c.b16 %v1251, %v1248
    %v1291 = vpack.c.b16 %v1252, %v1249
    %v1292 = vpack.c.b16 %v1253, %v1250
    %v1293 = vpack.c.b16 %v1257, %v1254
    %v1294 = vpack.c.b16 %v1258, %v1255
    %v1295 = vpack.c.b16 %v1259, %v1256
    %v1296 = vpack.c.b16 %v1263, %v1260
    %v1297 = vpack.c.b16 %v1264, %v1261
    %v1298 = vpack.c.b16 %v1265, %v1262
    %v1299 = vpack.c.b16 %v1269, %v1266
    %v1300 = vpack.c.b16 %v1270, %v1267
    %v1301 = vpack.c.b16 %v1271, %v1268
    %v1302 = vpack.c.b16 %v1275, %v1272
    %v1303 = vpack.c.b16 %v1276, %v1273
    %v1304 = vpack.c.b16 %v1277, %v1274
    %v1305 = vpack.c.b16 %v1281, %v1278
    %v1306 = vpack.c.b16 %v1282, %v1279
    %v1307 = vpack.c.b16 %v1283, %v1280
    %1332 = vmatpush.bf16.msra.mxu0 %v1305
    %1333 = vmatpush.bf16.msra.mxu0 %v1302
    %1334 = vmatpush.bf16.msra.mxu0 %v1299
    %1335 = vmatpush.bf16.msra.mxu0 %v1296
    %1336 = vmatpush.bf16.msra.mxu0 %v1293
    %1337 = vmatpush.bf16.msra.mxu0 %v1290
    %1338 = vmatpush.bf16.msra.mxu0 %v1287
    %1339 = vmatpush.bf16.msra.mxu0 %v1284
    %1340 = vmatmul.bf16.gmra.mxu0 %v1171
    %v1341 = vpop.f32.mrf.mxu0
    %v1342 = vadd.f32 0.0, %v1341
    %v1343 = vpop.f32.mrf.mxu0
    %1344 = vdwg.mxu0
    %1345 = vmatpush.bf16.msra.mxu0 %v1306
    %1346 = vmatpush.bf16.msra.mxu0 %v1303
    %1347 = vmatpush.bf16.msra.mxu0 %v1300
    %1348 = vmatpush.bf16.msra.mxu0 %v1297
    %1349 = vmatpush.bf16.msra.mxu0 %v1294
    %1350 = vmatpush.bf16.msra.mxu0 %v1291
    %1351 = vmatpush.bf16.msra.mxu0 %v1288
    %1352 = vmatpush.bf16.msra.mxu0 %v1285
    %1353 = vmatmul.bf16.gmra.mxu0 %v1171
    %v1354 = vpop.f32.mrf.mxu0
    %v1355 = vadd.f32 0.0, %v1354
    %v1356 = vpop.f32.mrf.mxu0
    %1357 = vdwg.mxu0
    %1358 = vmatpush.bf16.msra.mxu0 %v1307
    %1359 = vmatpush.bf16.msra.mxu0 %v1304
    %1360 = vmatpush.bf16.msra.mxu0 %v1301
    %1361 = vmatpush.bf16.msra.mxu0 %v1298
    %1362 = vmatpush.bf16.msra.mxu0 %v1295
    %1363 = vmatpush.bf16.msra.mxu0 %v1292
    %1364 = vmatpush.bf16.msra.mxu0 %v1289
    %1365 = vmatpush.bf16.msra.mxu0 %v1286
    %1366 = vmatmul.bf16.gmra.mxu0 %v1171
    %v1367 = vpop.f32.mrf.mxu0
    %v1368 = vadd.f32 0.0, %v1367
    %v1369 = vpop.f32.mrf.mxu0
    %1370 = vdwg.mxu0
    %s1371 = scalar_lea.vmem [#allocation3], 96
    %v1372 = vld [vmem:[%s1371] sm:$0xff]
    %v1373 = vld [vmem:[%s1371 + $0x8] sm:$0xff]
    %v1374 = vld [vmem:[%s1371 + $0x10] sm:$0xff]
    %v1375 = vadd.f32 %v1372, %v1342
    %v1376 = vmul.f32 %v1375, 0.5
    %v1377 = vtanh.pop %v1376
    %v1378 = vmul.f32 %v1377, 0.5
    %v1379 = vadd.f32 %v1378, 0.5
    %v1380 = vadd.f32 %v1373, %v1355
    %v1381 = vmul.f32 %v1380, 0.5
    %v1382 = vtanh.pop %v1381
    %v1383 = vmul.f32 %v1382, 0.5
    %v1384 = vadd.f32 %v1383, 0.5
    %v1385 = vadd.f32 %v1368, %v274
    %v1386 = vmul.f32 %v1379, %v1385
    %v1387 = vadd.f32 %v1374, %v1386
    %v1388 = vtanh.pop %v1387
    %v1389 = vsub.f32 1.0, %v1384
    %v1390 = vmul.f32 %v1389, %v1388
    %v1391 = vmul.f32 %v1384, %v1168
    %v1392 = vadd.f32 %v1390, %v1391
    %s1393 = scalar_lea.vmem [#allocation12], 32
    %1394 = vst [vmem:[%s1393] sm:$0xff] %v1392
    %v1395 = vpack.c.bf16 %v1392, %v1392
    %v1396 = vld [vmem:[#allocation10] sm:$0xff]
    %v1397 = vld [vmem:[#allocation10 + $0x8] sm:$0xf]
    %v1398 = vld [vmem:[#allocation10 + $0xc] sm:$0xff]
    %v1399 = vld [vmem:[#allocation10 + $0x14] sm:$0xf]
    %v1400 = vld [vmem:[#allocation10 + $0x18] sm:$0xff]
    %v1401 = vld [vmem:[#allocation10 + $0x20] sm:$0xf]
    %v1402 = vld [vmem:[#allocation10 + $0x24] sm:$0xff]
    %v1403 = vld [vmem:[#allocation10 + $0x2c] sm:$0xf]
    %v1404 = vld [vmem:[#allocation10 + $0x30] sm:$0xff]
    %v1405 = vld [vmem:[#allocation10 + $0x38] sm:$0xf]
    %v1406 = vld [vmem:[#allocation10 + $0x3c] sm:$0xff]
    %v1407 = vld [vmem:[#allocation10 + $0x44] sm:$0xf]
    %v1408 = vld [vmem:[#allocation10 + $0x48] sm:$0xff]
    %v1409 = vld [vmem:[#allocation10 + $0x50] sm:$0xf]
    %v1410 = vld [vmem:[#allocation10 + $0x54] sm:$0xff]
    %v1411 = vld [vmem:[#allocation10 + $0x5c] sm:$0xf]
    %v1412 = vld [vmem:[#allocation10 + $0x60] sm:$0xff]
    %v1413 = vld [vmem:[#allocation10 + $0x68] sm:$0xf]
    %v1414 = vld [vmem:[#allocation10 + $0x6c] sm:$0xff]
    %v1415 = vld [vmem:[#allocation10 + $0x74] sm:$0xf]
    %v1416 = vld [vmem:[#allocation10 + $0x78] sm:$0xff]
    %v1417 = vld [vmem:[#allocation10 + $0x80] sm:$0xf]
    %v1418 = vld [vmem:[#allocation10 + $0x84] sm:$0xff]
    %v1419 = vld [vmem:[#allocation10 + $0x8c] sm:$0xf]
    %v1420 = vld [vmem:[#allocation10 + $0x90] sm:$0xff]
    %v1421 = vld [vmem:[#allocation10 + $0x98] sm:$0xf]
    %v1422 = vld [vmem:[#allocation10 + $0x9c] sm:$0xff]
    %v1423 = vld [vmem:[#allocation10 + $0xa4] sm:$0xf]
    %v1424 = vld [vmem:[#allocation10 + $0xa8] sm:$0xff]
    %v1425 = vld [vmem:[#allocation10 + $0xb0] sm:$0xf]
    %v1426 = vld [vmem:[#allocation10 + $0xb4] sm:$0xff]
    %v1427 = vld [vmem:[#allocation10 + $0xbc] sm:$0xf]
    %v1460 = vunpack.c.l.b16 %v1396
    %v1461 = vunpack.c.h.b16 %v1396
    %v1462 = vunpack.c.l.b16 %v1397
    %v1463 = vunpack.c.l.b16 %v1398
    %v1464 = vunpack.c.h.b16 %v1398
    %v1465 = vunpack.c.l.b16 %v1399
    %v1466 = vunpack.c.l.b16 %v1400
    %v1467 = vunpack.c.h.b16 %v1400
    %v1468 = vunpack.c.l.b16 %v1401
    %v1469 = vunpack.c.l.b16 %v1402
    %v1470 = vunpack.c.h.b16 %v1402
    %v1471 = vunpack.c.l.b16 %v1403
    %v1472 = vunpack.c.l.b16 %v1404
    %v1473 = vunpack.c.h.b16 %v1404
    %v1474 = vunpack.c.l.b16 %v1405
    %v1475 = vunpack.c.l.b16 %v1406
    %v1476 = vunpack.c.h.b16 %v1406
    %v1477 = vunpack.c.l.b16 %v1407
    %v1478 = vunpack.c.l.b16 %v1408
    %v1479 = vunpack.c.h.b16 %v1408
    %v1480 = vunpack.c.l.b16 %v1409
    %v1481 = vunpack.c.l.b16 %v1410
    %v1482 = vunpack.c.h.b16 %v1410
    %v1483 = vunpack.c.l.b16 %v1411
    %v1484 = vunpack.c.l.b16 %v1412
    %v1485 = vunpack.c.h.b16 %v1412
    %v1486 = vunpack.c.l.b16 %v1413
    %v1487 = vunpack.c.l.b16 %v1414
    %v1488 = vunpack.c.h.b16 %v1414
    %v1489 = vunpack.c.l.b16 %v1415
    %v1490 = vunpack.c.l.b16 %v1416
    %v1491 = vunpack.c.h.b16 %v1416
    %v1492 = vunpack.c.l.b16 %v1417
    %v1493 = vunpack.c.l.b16 %v1418
    %v1494 = vunpack.c.h.b16 %v1418
    %v1495 = vunpack.c.l.b16 %v1419
    %v1496 = vunpack.c.l.b16 %v1420
    %v1497 = vunpack.c.h.b16 %v1420
    %v1498 = vunpack.c.l.b16 %v1421
    %v1499 = vunpack.c.l.b16 %v1422
    %v1500 = vunpack.c.h.b16 %v1422
    %v1501 = vunpack.c.l.b16 %v1423
    %v1502 = vunpack.c.l.b16 %v1424
    %v1503 = vunpack.c.h.b16 %v1424
    %v1504 = vunpack.c.l.b16 %v1425
    %v1505 = vunpack.c.l.b16 %v1426
    %v1506 = vunpack.c.h.b16 %v1426
    %v1507 = vunpack.c.l.b16 %v1427
    %v1508 = vpack.c.b16 %v1463, %v1460
    %v1509 = vpack.c.b16 %v1464, %v1461
    %v1510 = vpack.c.b16 %v1465, %v1462
    %v1511 = vpack.c.b16 %v1469, %v1466
    %v1512 = vpack.c.b16 %v1470, %v1467
    %v1513 = vpack.c.b16 %v1471, %v1468
    %v1514 = vpack.c.b16 %v1475, %v1472
    %v1515 = vpack.c.b16 %v1476, %v1473
    %v1516 = vpack.c.b16 %v1477, %v1474
    %v1517 = vpack.c.b16 %v1481, %v1478
    %v1518 = vpack.c.b16 %v1482, %v1479
    %v1519 = vpack.c.b16 %v1483, %v1480
    %v1520 = vpack.c.b16 %v1487, %v1484
    %v1521 = vpack.c.b16 %v1488, %v1485
    %v1522 = vpack.c.b16 %v1489, %v1486
    %v1523 = vpack.c.b16 %v1493, %v1490
    %v1524 = vpack.c.b16 %v1494, %v1491
    %v1525 = vpack.c.b16 %v1495, %v1492
    %v1526 = vpack.c.b16 %v1499, %v1496
    %v1527 = vpack.c.b16 %v1500, %v1497
    %v1528 = vpack.c.b16 %v1501, %v1498
    %v1529 = vpack.c.b16 %v1505, %v1502
    %v1530 = vpack.c.b16 %v1506, %v1503
    %v1531 = vpack.c.b16 %v1507, %v1504
    %1556 = vmatpush.bf16.msra.mxu0 %v1529
    %1557 = vmatpush.bf16.msra.mxu0 %v1526
    %1558 = vmatpush.bf16.msra.mxu0 %v1523
    %1559 = vmatpush.bf16.msra.mxu0 %v1520
    %1560 = vmatpush.bf16.msra.mxu0 %v1517
    %1561 = vmatpush.bf16.msra.mxu0 %v1514
    %1562 = vmatpush.bf16.msra.mxu0 %v1511
    %1563 = vmatpush.bf16.msra.mxu0 %v1508
    %1564 = vmatmul.bf16.gmra.mxu0 %v1395
    %v1565 = vpop.f32.mrf.mxu0
    %v1566 = vadd.f32 0.0, %v1565
    %v1567 = vpop.f32.mrf.mxu0
    %1568 = vdwg.mxu0
    %1569 = vmatpush.bf16.msra.mxu0 %v1530
    %1570 = vmatpush.bf16.msra.mxu0 %v1527
    %1571 = vmatpush.bf16.msra.mxu0 %v1524
    %1572 = vmatpush.bf16.msra.mxu0 %v1521
    %1573 = vmatpush.bf16.msra.mxu0 %v1518
    %1574 = vmatpush.bf16.msra.mxu0 %v1515
    %1575 = vmatpush.bf16.msra.mxu0 %v1512
    %1576 = vmatpush.bf16.msra.mxu0 %v1509
    %1577 = vmatmul.bf16.gmra.mxu0 %v1395
    %v1578 = vpop.f32.mrf.mxu0
    %v1579 = vadd.f32 0.0, %v1578
    %v1580 = vpop.f32.mrf.mxu0
    %1581 = vdwg.mxu0
    %1582 = vmatpush.bf16.msra.mxu0 %v1531
    %1583 = vmatpush.bf16.msra.mxu0 %v1528
    %1584 = vmatpush.bf16.msra.mxu0 %v1525
    %1585 = vmatpush.bf16.msra.mxu0 %v1522
    %1586 = vmatpush.bf16.msra.mxu0 %v1519
    %1587 = vmatpush.bf16.msra.mxu0 %v1516
    %1588 = vmatpush.bf16.msra.mxu0 %v1513
    %1589 = vmatpush.bf16.msra.mxu0 %v1510
    %1590 = vmatmul.bf16.gmra.mxu0 %v1395
    %v1591 = vpop.f32.mrf.mxu0
    %v1592 = vadd.f32 0.0, %v1591
    %v1593 = vpop.f32.mrf.mxu0
    %1594 = vdwg.mxu0
    %s1595 = scalar_lea.vmem [#allocation3], 120
    %v1596 = vld [vmem:[%s1595] sm:$0xff]
    %v1597 = vld [vmem:[%s1595 + $0x8] sm:$0xff]
    %v1598 = vld [vmem:[%s1595 + $0x10] sm:$0xff]
    %v1599 = vadd.f32 %v1596, %v1566
    %v1600 = vmul.f32 %v1599, 0.5
    %v1601 = vtanh.pop %v1600
    %v1602 = vmul.f32 %v1601, 0.5
    %v1603 = vadd.f32 %v1602, 0.5
    %v1604 = vadd.f32 %v1597, %v1579
    %v1605 = vmul.f32 %v1604, 0.5
    %v1606 = vtanh.pop %v1605
    %v1607 = vmul.f32 %v1606, 0.5
    %v1608 = vadd.f32 %v1607, 0.5
    %v1609 = vadd.f32 %v1592, %v274
    %v1610 = vmul.f32 %v1603, %v1609
    %v1611 = vadd.f32 %v1598, %v1610
    %v1612 = vtanh.pop %v1611
    %v1613 = vsub.f32 1.0, %v1608
    %v1614 = vmul.f32 %v1613, %v1612
    %v1615 = vmul.f32 %v1608, %v1392
    %v1616 = vadd.f32 %v1614, %v1615
    %s1617 = scalar_lea.vmem [#allocation12], 40
    %1618 = vst [vmem:[%s1617] sm:$0xff] %v1616
    %v1619 = vpack.c.bf16 %v1616, %v1616
    %v1620 = vld [vmem:[#allocation10] sm:$0xff]
    %v1621 = vld [vmem:[#allocation10 + $0x8] sm:$0xf]
    %v1622 = vld [vmem:[#allocation10 + $0xc] sm:$0xff]
    %v1623 = vld [vmem:[#allocation10 + $0x14] sm:$0xf]
    %v1624 = vld [vmem:[#allocation10 + $0x18] sm:$0xff]
    %v1625 = vld [vmem:[#allocation10 + $0x20] sm:$0xf]
    %v1626 = vld [vmem:[#allocation10 + $0x24] sm:$0xff]
    %v1627 = vld [vmem:[#allocation10 + $0x2c] sm:$0xf]
    %v1628 = vld [vmem:[#allocation10 + $0x30] sm:$0xff]
    %v1629 = vld [vmem:[#allocation10 + $0x38] sm:$0xf]
    %v1630 = vld [vmem:[#allocation10 + $0x3c] sm:$0xff]
    %v1631 = vld [vmem:[#allocation10 + $0x44] sm:$0xf]
    %v1632 = vld [vmem:[#allocation10 + $0x48] sm:$0xff]
    %v1633 = vld [vmem:[#allocation10 + $0x50] sm:$0xf]
    %v1634 = vld [vmem:[#allocation10 + $0x54] sm:$0xff]
    %v1635 = vld [vmem:[#allocation10 + $0x5c] sm:$0xf]
    %v1636 = vld [vmem:[#allocation10 + $0x60] sm:$0xff]
    %v1637 = vld [vmem:[#allocation10 + $0x68] sm:$0xf]
    %v1638 = vld [vmem:[#allocation10 + $0x6c] sm:$0xff]
    %v1639 = vld [vmem:[#allocation10 + $0x74] sm:$0xf]
    %v1640 = vld [vmem:[#allocation10 + $0x78] sm:$0xff]
    %v1641 = vld [vmem:[#allocation10 + $0x80] sm:$0xf]
    %v1642 = vld [vmem:[#allocation10 + $0x84] sm:$0xff]
    %v1643 = vld [vmem:[#allocation10 + $0x8c] sm:$0xf]
    %v1644 = vld [vmem:[#allocation10 + $0x90] sm:$0xff]
    %v1645 = vld [vmem:[#allocation10 + $0x98] sm:$0xf]
    %v1646 = vld [vmem:[#allocation10 + $0x9c] sm:$0xff]
    %v1647 = vld [vmem:[#allocation10 + $0xa4] sm:$0xf]
    %v1648 = vld [vmem:[#allocation10 + $0xa8] sm:$0xff]
    %v1649 = vld [vmem:[#allocation10 + $0xb0] sm:$0xf]
    %v1650 = vld [vmem:[#allocation10 + $0xb4] sm:$0xff]
    %v1651 = vld [vmem:[#allocation10 + $0xbc] sm:$0xf]
    %v1684 = vunpack.c.l.b16 %v1620
    %v1685 = vunpack.c.h.b16 %v1620
    %v1686 = vunpack.c.l.b16 %v1621
    %v1687 = vunpack.c.l.b16 %v1622
    %v1688 = vunpack.c.h.b16 %v1622
    %v1689 = vunpack.c.l.b16 %v1623
    %v1690 = vunpack.c.l.b16 %v1624
    %v1691 = vunpack.c.h.b16 %v1624
    %v1692 = vunpack.c.l.b16 %v1625
    %v1693 = vunpack.c.l.b16 %v1626
    %v1694 = vunpack.c.h.b16 %v1626
    %v1695 = vunpack.c.l.b16 %v1627
    %v1696 = vunpack.c.l.b16 %v1628
    %v1697 = vunpack.c.h.b16 %v1628
    %v1698 = vunpack.c.l.b16 %v1629
    %v1699 = vunpack.c.l.b16 %v1630
    %v1700 = vunpack.c.h.b16 %v1630
    %v1701 = vunpack.c.l.b16 %v1631
    %v1702 = vunpack.c.l.b16 %v1632
    %v1703 = vunpack.c.h.b16 %v1632
    %v1704 = vunpack.c.l.b16 %v1633
    %v1705 = vunpack.c.l.b16 %v1634
    %v1706 = vunpack.c.h.b16 %v1634
    %v1707 = vunpack.c.l.b16 %v1635
    %v1708 = vunpack.c.l.b16 %v1636
    %v1709 = vunpack.c.h.b16 %v1636
    %v1710 = vunpack.c.l.b16 %v1637
    %v1711 = vunpack.c.l.b16 %v1638
    %v1712 = vunpack.c.h.b16 %v1638
    %v1713 = vunpack.c.l.b16 %v1639
    %v1714 = vunpack.c.l.b16 %v1640
    %v1715 = vunpack.c.h.b16 %v1640
    %v1716 = vunpack.c.l.b16 %v1641
    %v1717 = vunpack.c.l.b16 %v1642
    %v1718 = vunpack.c.h.b16 %v1642
    %v1719 = vunpack.c.l.b16 %v1643
    %v1720 = vunpack.c.l.b16 %v1644
    %v1721 = vunpack.c.h.b16 %v1644
    %v1722 = vunpack.c.l.b16 %v1645
    %v1723 = vunpack.c.l.b16 %v1646
    %v1724 = vunpack.c.h.b16 %v1646
    %v1725 = vunpack.c.l.b16 %v1647
    %v1726 = vunpack.c.l.b16 %v1648
    %v1727 = vunpack.c.h.b16 %v1648
    %v1728 = vunpack.c.l.b16 %v1649
    %v1729 = vunpack.c.l.b16 %v1650
    %v1730 = vunpack.c.h.b16 %v1650
    %v1731 = vunpack.c.l.b16 %v1651
    %v1732 = vpack.c.b16 %v1687, %v1684
    %v1733 = vpack.c.b16 %v1688, %v1685
    %v1734 = vpack.c.b16 %v1689, %v1686
    %v1735 = vpack.c.b16 %v1693, %v1690
    %v1736 = vpack.c.b16 %v1694, %v1691
    %v1737 = vpack.c.b16 %v1695, %v1692
    %v1738 = vpack.c.b16 %v1699, %v1696
    %v1739 = vpack.c.b16 %v1700, %v1697
    %v1740 = vpack.c.b16 %v1701, %v1698
    %v1741 = vpack.c.b16 %v1705, %v1702
    %v1742 = vpack.c.b16 %v1706, %v1703
    %v1743 = vpack.c.b16 %v1707, %v1704
    %v1744 = vpack.c.b16 %v1711, %v1708
    %v1745 = vpack.c.b16 %v1712, %v1709
    %v1746 = vpack.c.b16 %v1713, %v1710
    %v1747 = vpack.c.b16 %v1717, %v1714
    %v1748 = vpack.c.b16 %v1718, %v1715
    %v1749 = vpack.c.b16 %v1719, %v1716
    %v1750 = vpack.c.b16 %v1723, %v1720
    %v1751 = vpack.c.b16 %v1724, %v1721
    %v1752 = vpack.c.b16 %v1725, %v1722
    %v1753 = vpack.c.b16 %v1729, %v1726
    %v1754 = vpack.c.b16 %v1730, %v1727
    %v1755 = vpack.c.b16 %v1731, %v1728
    %1780 = vmatpush.bf16.msra.mxu0 %v1753
    %1781 = vmatpush.bf16.msra.mxu0 %v1750
    %1782 = vmatpush.bf16.msra.mxu0 %v1747
    %1783 = vmatpush.bf16.msra.mxu0 %v1744
    %1784 = vmatpush.bf16.msra.mxu0 %v1741
    %1785 = vmatpush.bf16.msra.mxu0 %v1738
    %1786 = vmatpush.bf16.msra.mxu0 %v1735
    %1787 = vmatpush.bf16.msra.mxu0 %v1732
    %1788 = vmatmul.bf16.gmra.mxu0 %v1619
    %v1789 = vpop.f32.mrf.mxu0
    %v1790 = vadd.f32 0.0, %v1789
    %v1791 = vpop.f32.mrf.mxu0
    %1792 = vdwg.mxu0
    %1793 = vmatpush.bf16.msra.mxu0 %v1754
    %1794 = vmatpush.bf16.msra.mxu0 %v1751
    %1795 = vmatpush.bf16.msra.mxu0 %v1748
    %1796 = vmatpush.bf16.msra.mxu0 %v1745
    %1797 = vmatpush.bf16.msra.mxu0 %v1742
    %1798 = vmatpush.bf16.msra.mxu0 %v1739
    %1799 = vmatpush.bf16.msra.mxu0 %v1736
    %1800 = vmatpush.bf16.msra.mxu0 %v1733
    %1801 = vmatmul.bf16.gmra.mxu0 %v1619
    %v1802 = vpop.f32.mrf.mxu0
    %v1803 = vadd.f32 0.0, %v1802
    %v1804 = vpop.f32.mrf.mxu0
    %1805 = vdwg.mxu0
    %1806 = vmatpush.bf16.msra.mxu0 %v1755
    %1807 = vmatpush.bf16.msra.mxu0 %v1752
    %1808 = vmatpush.bf16.msra.mxu0 %v1749
    %1809 = vmatpush.bf16.msra.mxu0 %v1746
    %1810 = vmatpush.bf16.msra.mxu0 %v1743
    %1811 = vmatpush.bf16.msra.mxu0 %v1740
    %1812 = vmatpush.bf16.msra.mxu0 %v1737
    %1813 = vmatpush.bf16.msra.mxu0 %v1734
    %1814 = vmatmul.bf16.gmra.mxu0 %v1619
    %v1815 = vpop.f32.mrf.mxu0
    %v1816 = vadd.f32 0.0, %v1815
    %v1817 = vpop.f32.mrf.mxu0
    %1818 = vdwg.mxu0
    %s1819 = scalar_lea.vmem [#allocation3], 144
    %v1820 = vld [vmem:[%s1819] sm:$0xff]
    %v1821 = vld [vmem:[%s1819 + $0x8] sm:$0xff]
    %v1822 = vld [vmem:[%s1819 + $0x10] sm:$0xff]
    %v1823 = vadd.f32 %v1820, %v1790
    %v1824 = vmul.f32 %v1823, 0.5
    %v1825 = vtanh.pop %v1824
    %v1826 = vmul.f32 %v1825, 0.5
    %v1827 = vadd.f32 %v1826, 0.5
    %v1828 = vadd.f32 %v1821, %v1803
    %v1829 = vmul.f32 %v1828, 0.5
    %v1830 = vtanh.pop %v1829
    %v1831 = vmul.f32 %v1830, 0.5
    %v1832 = vadd.f32 %v1831, 0.5
    %v1833 = vadd.f32 %v1816, %v274
    %v1834 = vmul.f32 %v1827, %v1833
    %v1835 = vadd.f32 %v1822, %v1834
    %v1836 = vtanh.pop %v1835
    %v1837 = vsub.f32 1.0, %v1832
    %v1838 = vmul.f32 %v1837, %v1836
    %v1839 = vmul.f32 %v1832, %v1616
    %v1840 = vadd.f32 %v1838, %v1839
    %s1841 = scalar_lea.vmem [#allocation12], 48
    %1842 = vst [vmem:[%s1841] sm:$0xff] %v1840
    %v1843 = vpack.c.bf16 %v1840, %v1840
    %v1844 = vld [vmem:[#allocation10] sm:$0xff]
    %v1845 = vld [vmem:[#allocation10 + $0x8] sm:$0xf]
    %v1846 = vld [vmem:[#allocation10 + $0xc] sm:$0xff]
    %v1847 = vld [vmem:[#allocation10 + $0x14] sm:$0xf]
    %v1848 = vld [vmem:[#allocation10 + $0x18] sm:$0xff]
    %v1849 = vld [vmem:[#allocation10 + $0x20] sm:$0xf]
    %v1850 = vld [vmem:[#allocation10 + $0x24] sm:$0xff]
    %v1851 = vld [vmem:[#allocation10 + $0x2c] sm:$0xf]
    %v1852 = vld [vmem:[#allocation10 + $0x30] sm:$0xff]
    %v1853 = vld [vmem:[#allocation10 + $0x38] sm:$0xf]
    %v1854 = vld [vmem:[#allocation10 + $0x3c] sm:$0xff]
    %v1855 = vld [vmem:[#allocation10 + $0x44] sm:$0xf]
    %v1856 = vld [vmem:[#allocation10 + $0x48] sm:$0xff]
    %v1857 = vld [vmem:[#allocation10 + $0x50] sm:$0xf]
    %v1858 = vld [vmem:[#allocation10 + $0x54] sm:$0xff]
    %v1859 = vld [vmem:[#allocation10 + $0x5c] sm:$0xf]
    %v1860 = vld [vmem:[#allocation10 + $0x60] sm:$0xff]
    %v1861 = vld [vmem:[#allocation10 + $0x68] sm:$0xf]
    %v1862 = vld [vmem:[#allocation10 + $0x6c] sm:$0xff]
    %v1863 = vld [vmem:[#allocation10 + $0x74] sm:$0xf]
    %v1864 = vld [vmem:[#allocation10 + $0x78] sm:$0xff]
    %v1865 = vld [vmem:[#allocation10 + $0x80] sm:$0xf]
    %v1866 = vld [vmem:[#allocation10 + $0x84] sm:$0xff]
    %v1867 = vld [vmem:[#allocation10 + $0x8c] sm:$0xf]
    %v1868 = vld [vmem:[#allocation10 + $0x90] sm:$0xff]
    %v1869 = vld [vmem:[#allocation10 + $0x98] sm:$0xf]
    %v1870 = vld [vmem:[#allocation10 + $0x9c] sm:$0xff]
    %v1871 = vld [vmem:[#allocation10 + $0xa4] sm:$0xf]
    %v1872 = vld [vmem:[#allocation10 + $0xa8] sm:$0xff]
    %v1873 = vld [vmem:[#allocation10 + $0xb0] sm:$0xf]
    %v1874 = vld [vmem:[#allocation10 + $0xb4] sm:$0xff]
    %v1875 = vld [vmem:[#allocation10 + $0xbc] sm:$0xf]
    %v1908 = vunpack.c.l.b16 %v1844
    %v1909 = vunpack.c.h.b16 %v1844
    %v1910 = vunpack.c.l.b16 %v1845
    %v1911 = vunpack.c.l.b16 %v1846
    %v1912 = vunpack.c.h.b16 %v1846
    %v1913 = vunpack.c.l.b16 %v1847
    %v1914 = vunpack.c.l.b16 %v1848
    %v1915 = vunpack.c.h.b16 %v1848
    %v1916 = vunpack.c.l.b16 %v1849
    %v1917 = vunpack.c.l.b16 %v1850
    %v1918 = vunpack.c.h.b16 %v1850
    %v1919 = vunpack.c.l.b16 %v1851
    %v1920 = vunpack.c.l.b16 %v1852
    %v1921 = vunpack.c.h.b16 %v1852
    %v1922 = vunpack.c.l.b16 %v1853
    %v1923 = vunpack.c.l.b16 %v1854
    %v1924 = vunpack.c.h.b16 %v1854
    %v1925 = vunpack.c.l.b16 %v1855
    %v1926 = vunpack.c.l.b16 %v1856
    %v1927 = vunpack.c.h.b16 %v1856
    %v1928 = vunpack.c.l.b16 %v1857
    %v1929 = vunpack.c.l.b16 %v1858
    %v1930 = vunpack.c.h.b16 %v1858
    %v1931 = vunpack.c.l.b16 %v1859
    %v1932 = vunpack.c.l.b16 %v1860
    %v1933 = vunpack.c.h.b16 %v1860
    %v1934 = vunpack.c.l.b16 %v1861
    %v1935 = vunpack.c.l.b16 %v1862
    %v1936 = vunpack.c.h.b16 %v1862
    %v1937 = vunpack.c.l.b16 %v1863
    %v1938 = vunpack.c.l.b16 %v1864
    %v1939 = vunpack.c.h.b16 %v1864
    %v1940 = vunpack.c.l.b16 %v1865
    %v1941 = vunpack.c.l.b16 %v1866
    %v1942 = vunpack.c.h.b16 %v1866
    %v1943 = vunpack.c.l.b16 %v1867
    %v1944 = vunpack.c.l.b16 %v1868
    %v1945 = vunpack.c.h.b16 %v1868
    %v1946 = vunpack.c.l.b16 %v1869
    %v1947 = vunpack.c.l.b16 %v1870
    %v1948 = vunpack.c.h.b16 %v1870
    %v1949 = vunpack.c.l.b16 %v1871
    %v1950 = vunpack.c.l.b16 %v1872
    %v1951 = vunpack.c.h.b16 %v1872
    %v1952 = vunpack.c.l.b16 %v1873
    %v1953 = vunpack.c.l.b16 %v1874
    %v1954 = vunpack.c.h.b16 %v1874
    %v1955 = vunpack.c.l.b16 %v1875
    %v1956 = vpack.c.b16 %v1911, %v1908
    %v1957 = vpack.c.b16 %v1912, %v1909
    %v1958 = vpack.c.b16 %v1913, %v1910
    %v1959 = vpack.c.b16 %v1917, %v1914
    %v1960 = vpack.c.b16 %v1918, %v1915
    %v1961 = vpack.c.b16 %v1919, %v1916
    %v1962 = vpack.c.b16 %v1923, %v1920
    %v1963 = vpack.c.b16 %v1924, %v1921
    %v1964 = vpack.c.b16 %v1925, %v1922
    %v1965 = vpack.c.b16 %v1929, %v1926
    %v1966 = vpack.c.b16 %v1930, %v1927
    %v1967 = vpack.c.b16 %v1931, %v1928
    %v1968 = vpack.c.b16 %v1935, %v1932
    %v1969 = vpack.c.b16 %v1936, %v1933
    %v1970 = vpack.c.b16 %v1937, %v1934
    %v1971 = vpack.c.b16 %v1941, %v1938
    %v1972 = vpack.c.b16 %v1942, %v1939
    %v1973 = vpack.c.b16 %v1943, %v1940
    %v1974 = vpack.c.b16 %v1947, %v1944
    %v1975 = vpack.c.b16 %v1948, %v1945
    %v1976 = vpack.c.b16 %v1949, %v1946
    %v1977 = vpack.c.b16 %v1953, %v1950
    %v1978 = vpack.c.b16 %v1954, %v1951
    %v1979 = vpack.c.b16 %v1955, %v1952
    %2004 = vmatpush.bf16.msra.mxu0 %v1977
    %2005 = vmatpush.bf16.msra.mxu0 %v1974
    %2006 = vmatpush.bf16.msra.mxu0 %v1971
    %2007 = vmatpush.bf16.msra.mxu0 %v1968
    %2008 = vmatpush.bf16.msra.mxu0 %v1965
    %2009 = vmatpush.bf16.msra.mxu0 %v1962
    %2010 = vmatpush.bf16.msra.mxu0 %v1959
    %2011 = vmatpush.bf16.msra.mxu0 %v1956
    %2012 = vmatmul.bf16.gmra.mxu0 %v1843
    %v2013 = vpop.f32.mrf.mxu0
    %v2014 = vadd.f32 0.0, %v2013
    %v2015 = vpop.f32.mrf.mxu0
    %2016 = vdwg.mxu0
    %2017 = vmatpush.bf16.msra.mxu0 %v1978
    %2018 = vmatpush.bf16.msra.mxu0 %v1975
    %2019 = vmatpush.bf16.msra.mxu0 %v1972
    %2020 = vmatpush.bf16.msra.mxu0 %v1969
    %2021 = vmatpush.bf16.msra.mxu0 %v1966
    %2022 = vmatpush.bf16.msra.mxu0 %v1963
    %2023 = vmatpush.bf16.msra.mxu0 %v1960
    %2024 = vmatpush.bf16.msra.mxu0 %v1957
    %2025 = vmatmul.bf16.gmra.mxu0 %v1843
    %v2026 = vpop.f32.mrf.mxu0
    %v2027 = vadd.f32 0.0, %v2026
    %v2028 = vpop.f32.mrf.mxu0
    %2029 = vdwg.mxu0
    %2030 = vmatpush.bf16.msra.mxu0 %v1979
    %2031 = vmatpush.bf16.msra.mxu0 %v1976
    %2032 = vmatpush.bf16.msra.mxu0 %v1973
    %2033 = vmatpush.bf16.msra.mxu0 %v1970
    %2034 = vmatpush.bf16.msra.mxu0 %v1967
    %2035 = vmatpush.bf16.msra.mxu0 %v1964
    %2036 = vmatpush.bf16.msra.mxu0 %v1961
    %2037 = vmatpush.bf16.msra.mxu0 %v1958
    %2038 = vmatmul.bf16.gmra.mxu0 %v1843
    %v2039 = vpop.f32.mrf.mxu0
    %v2040 = vadd.f32 0.0, %v2039
    %v2041 = vpop.f32.mrf.mxu0
    %2042 = vdwg.mxu0
    %s2043 = scalar_lea.vmem [#allocation3], 168
    %v2044 = vld [vmem:[%s2043] sm:$0xff]
    %v2045 = vld [vmem:[%s2043 + $0x8] sm:$0xff]
    %v2046 = vld [vmem:[%s2043 + $0x10] sm:$0xff]
    %v2047 = vadd.f32 %v2044, %v2014
    %v2048 = vmul.f32 %v2047, 0.5
    %v2049 = vtanh.pop %v2048
    %v2050 = vmul.f32 %v2049, 0.5
    %v2051 = vadd.f32 %v2050, 0.5
    %v2052 = vadd.f32 %v2045, %v2027
    %v2053 = vmul.f32 %v2052, 0.5
    %v2054 = vtanh.pop %v2053
    %v2055 = vmul.f32 %v2054, 0.5
    %v2056 = vadd.f32 %v2055, 0.5
    %v2057 = vadd.f32 %v2040, %v274
    %v2058 = vmul.f32 %v2051, %v2057
    %v2059 = vadd.f32 %v2046, %v2058
    %v2060 = vtanh.pop %v2059
    %v2061 = vsub.f32 1.0, %v2056
    %v2062 = vmul.f32 %v2061, %v2060
    %v2063 = vmul.f32 %v2056, %v1840
    %v2064 = vadd.f32 %v2062, %v2063
    %s2065 = scalar_lea.vmem [#allocation12], 56
    %2066 = vst [vmem:[%s2065] sm:$0xff] %v2064
    %2067 = vst [vmem:[#allocation2] sm:$0xff] %v2064
    // Predicated region
    $region46: #{tpu_custom_call.1} parent=1 // pred_check
      _
    $region47: #{tpu_custom_call.1} parent=1 // pred_check_branch
      %2069 = sbr.rel (0) target = $region49
    $region48: #{tpu_custom_call.1} parent=1 // pred_region
      %2071 = vsyncadd [#allocation6], 0
      %s2072 = sshll.u32 [#allocation12], 4
      %s2073 = int_to_ptr.vmem [resolvable:$true] %s2072
      %s2074 = sshll.u32 %s6, 4
      %s2075 = int_to_ptr.hbm [resolvable:$true] %s2074
      %2080 = dma.vmem_to_hbm [thread:$0]  %s2073, 1024, %s2075, [#allocation6], 128, 128, 8
    $region49: #{tpu_custom_call.1} parent=1 // pred_fallthru
      _
    // Predicated region
    $region50: #{tpu_custom_call.1} parent=1 // pred_check
      _
    $region51: #{tpu_custom_call.1} parent=1 // pred_check_branch
      %2082 = sbr.rel (0) target = $region53
    $region52: #{tpu_custom_call.1} parent=1 // pred_region
      %2084 = dma.done [#allocation6], 1024
    $region53: #{tpu_custom_call.1} parent=1 // pred_fallthru
      _
    %2085 = vsyncpa [#allocation5], 1
    %2086 = vsyncpa [#allocation8], 1
    %2087 = vsyncpa [#allocation11], 1
    %2088 = vsyncpa [#allocation6], 1

</llo_original>
